<compile_context>
chip_gen: v7x
topology: tpu7x:2x2x1
jax: 0.10.0
libtpu: 0.0.40
codegen_flags: <defaults>
</compile_context>

<pallas_src>
import functools
import math

import jax
import jax.numpy as jnp
from jax.experimental import pallas as pl
from jax.experimental.pallas import tpu as pltpu


def _attention_kernel(xq_ref, xkv_ref, wqkv_ref, wo_ref, bo_ref, o_ref,
                      oheads_ref, *, heads, dim_head):
    # xq_ref : [tq, D]   query rows of x for this (batch, q-tile)
    # xkv_ref: [N,  D]   full sequence rows of x for this batch element
    # wqkv_ref: [D, 3*inner]  (q columns pre-scaled by dim_head**-0.5)
    # wo_ref : [inner, D]     bo_ref: [1, D]
    # o_ref  : [tq, D]        oheads_ref: [tq, inner] VMEM scratch
    inner = heads * dim_head

    xq = xq_ref[...]                                                  # [tq, D]
    xkv = xkv_ref[...]                                                # [N, D]

    # Fused, lane-dense projections: one matmul for q (query rows only) and
    # one for k|v (full sequence).  f32 accumulation on the MXU.
    q = jnp.dot(xq, wqkv_ref[:, :inner],
                preferred_element_type=jnp.float32)                   # [tq, inner]
    kv = jnp.dot(xkv, wqkv_ref[:, inner:],
                 preferred_element_type=jnp.float32)                  # [N, 2*inner]
    k = kv[:, :inner]
    v = kv[:, inner:]

    cdt = xq_ref.dtype
    if cdt != jnp.float32:   # bf16 MXU path; accumulation stays f32
        q = q.astype(cdt)
        k = k.astype(cdt)
        v = v.astype(cdt)

    # Static unroll over heads (heads is a small Python int).
    for h in range(heads):
        sl = slice(h * dim_head, (h + 1) * dim_head)
        # Scores: contract over dim_head without materialising k.T
        s = jax.lax.dot_general(q[:, sl], k[:, sl],
                                (((1,), (1,)), ((), ())),
                                preferred_element_type=jnp.float32)   # [tq, N]
        m = jnp.max(s, axis=-1, keepdims=True)
        e = jnp.exp(s - m)                                            # [tq, N]
        l = jnp.sum(e, axis=-1, keepdims=True)                        # [tq, 1]
        o = jnp.dot(e.astype(v.dtype), v[:, sl],
                    preferred_element_type=jnp.float32)               # [tq, dh]
        # Deferred softmax normalisation: tq*dh multiplies instead of tq*N
        # divides.  (approx=True would move this onto the EUP slot at a small
        # accuracy cost; keep exact here.)
        oheads_ref[:, sl] = (o * pl.reciprocal(l, approx=False)
                             ).astype(oheads_ref.dtype)

    # Single wide output projection across all heads (K = inner).
    out = jnp.dot(oheads_ref[...], wo_ref[...],
                  preferred_element_type=jnp.float32)                 # [tq, D]
    o_ref[...] = (out + bo_ref[...].astype(jnp.float32)).astype(o_ref.dtype)


def prepare_attention_params(w_qkv, w_out, b_out, *, heads, compute_dtype=None):
    """One-time parameter prep (hoisted out of the per-call path).

    w_qkv : [D, 3*inner]  (transpose of PyTorch to_qkv.weight; no bias)
    w_out : [inner, D]    (transpose of PyTorch to_out[0].weight)
    b_out : [D]
    Folds the attention scale into the q-projection columns and optionally
    casts to the MXU compute dtype (e.g. bf16); accumulation stays f32.
    """
    dim, three_inner = w_qkv.shape
    inner = three_inner // 3
    assert three_inner == 3 * inner and inner % heads == 0
    dim_head = inner // heads
    scale = dim_head ** (-0.5)
    w_qkv = w_qkv.at[:, :inner].multiply(scale)   # q <- q * scale, for free
    b_out = b_out.reshape(1, dim)
    if compute_dtype is not None:
        w_qkv = w_qkv.astype(compute_dtype)
        w_out = w_out.astype(compute_dtype)
        b_out = b_out.astype(compute_dtype)
    return w_qkv, w_out, b_out


def attention(x, params, *, heads, compute_dtype=None, q_block=None):
    """Fused multi-head attention forward.

    x      : [B, N, D]
    params : output of prepare_attention_params
    Returns [B, N, D] in x.dtype.  Dropout(p=0.0) is the identity.
    """
    w_qkv, w_out, b_out = params
    B, N, D = x.shape
    inner = w_qkv.shape[1] // 3
    assert inner % heads == 0
    dim_head = inner // heads

    out_dtype = x.dtype
    if compute_dtype is not None:
        x = x.astype(compute_dtype)
    cdtype = x.dtype
    if w_qkv.dtype != cdtype:      # params should already be prepared in cdtype
        w_qkv = w_qkv.astype(cdtype)
        w_out = w_out.astype(cdtype)
        b_out = b_out.astype(cdtype)

    # Dtype-aware sublane constraint (f32 -> 8, bf16 -> 16, int8/fp8 -> 32).
    itemsize = jnp.dtype(cdtype).itemsize
    min_sub = max(8, 32 // itemsize)

    if q_block is None:
        if N <= 256:
            q_block = N
        else:
            q_block = next((c for c in (256, 128, 64, 32) if N % c == 0), N)
    assert N % q_block == 0 and q_block % min_sub == 0, (
        f"seq len {N} / q_block {q_block} must be a multiple of {min_sub} "
        f"sublanes for dtype {cdtype}")
    NQ = N // q_block
    tq = q_block

    # VMEM budget: x tiles + resident weights + output tile + in-kernel f32
    # q/kv/score temporaries + head-output scratch, with slack; clamped to the
    # actual generation's VMEM capacity (64 MiB/TC on v7x, 128 MiB on v5e/v6e).
    footprint = (
        2 * (tq + N) * D * itemsize                         # x query / kv tiles (dbl-buf)
        + 2 * (D * 3 * inner + inner * D + D) * itemsize     # resident weight slabs
        + 2 * tq * D * jnp.dtype(out_dtype).itemsize         # output tile (dbl-buf)
        + tq * inner * itemsize                               # head-output scratch
        + (tq * inner + 2 * N * inner) * 4                    # q, kv f32 intermediates
        + 3 * tq * N * 4                                      # score/exp f32 temporaries
        + 2 * tq * D * 4                                      # f32 output temporary
    )
    footprint = int(footprint * 5 // 4) + (2 << 20)           # compiler slack
    try:
        vmem_cap = int(pltpu.get_tpu_info().vmem_capacity_bytes)
    except Exception:
        vmem_cap = 64 << 20                                    # safe on all gens
    vmem_budget = int(min((vmem_cap * 9) // 10, max(32 << 20, footprint)))

    x2d = x.reshape(B * N, D)

    out2d = pl.pallas_call(
        functools.partial(_attention_kernel, heads=heads, dim_head=dim_head),
        out_shape=jax.ShapeDtypeStruct((B * N, D), out_dtype),
        grid_spec=pltpu.PrefetchScalarGridSpec(
            num_scalar_prefetch=0,
            grid=(B, NQ),
            in_specs=[
                # query rows for this (batch, q-tile)
                pl.BlockSpec((tq, D), lambda b, i: (b * NQ + i, 0)),
                # full-sequence rows for K/V of this batch element
                pl.BlockSpec((N, D), lambda b, i: (b, 0)),
                # grid-resident weight slabs (constant block index -> one DMA)
                pl.BlockSpec((D, 3 * inner), lambda b, i: (0, 0)),
                pl.BlockSpec((inner, D), lambda b, i: (0, 0)),
                pl.BlockSpec((1, D), lambda b, i: (0, 0)),
            ],
            out_specs=pl.BlockSpec((tq, D), lambda b, i: (b * NQ + i, 0)),
            scratch_shapes=[pltpu.VMEM((tq, inner), cdtype)],
        ),
        compiler_params=pltpu.CompilerParams(
            dimension_semantics=("parallel", "parallel"),
            vmem_limit_bytes=vmem_budget,
        ),
    )(x2d, x2d, w_qkv, w_out, b_out)

    return out2d.reshape(B, N, D)


def init_params(key, dim, heads, dim_head, dtype=jnp.float32):
    """Synthetic init mimicking nn.Linear's uniform(-1/sqrt(fan_in), +)."""
    inner = heads * dim_head
    k1, k2, k3 = jax.random.split(key, 3)
    lim_qkv = 1.0 / math.sqrt(dim)
    lim_out = 1.0 / math.sqrt(inner)
    w_qkv = jax.random.uniform(k1, (dim, 3 * inner), dtype, minval=-lim_qkv, maxval=lim_qkv)
    w_out = jax.random.uniform(k2, (inner, dim), dtype, minval=-lim_out, maxval=lim_out)
    b_out = jax.random.uniform(k3, (dim,), dtype, minval=-lim_out, maxval=lim_out)
    return w_qkv, w_out, b_out


def attention_ref(x, w_qkv, w_out, b_out, *, heads):
    """Pure-JAX reference matching the PyTorch Attention.forward."""
    B, N, D = x.shape
    inner = w_qkv.shape[1] // 3
    dh = inner // heads
    qkv = jnp.einsum("bnd,de->bne", x, w_qkv)
    q, k, v = jnp.split(qkv, 3, axis=-1)
    split_heads = lambda t: t.reshape(B, N, heads, dh).transpose(0, 2, 1, 3)
    q, k, v = map(split_heads, (q, k, v))
    dots = jnp.einsum("bhid,bhjd->bhij", q, k) * (dh ** -0.5)
    attn = jax.nn.softmax(dots, axis=-1)
    out = jnp.einsum("bhij,bhjd->bhid", attn, v)
    out = out.transpose(0, 2, 1, 3).reshape(B, N, inner)
    return jnp.einsum("bni,id->bnd", out, w_out) + b_out  # Dropout(0) == identity


if __name__ == "__main__":
    B, N, dim, heads, dim_head = 2, 8, 32, 8, 32   # inner_dim = 256

    key = jax.random.PRNGKey(0)
    kx, kx2, kp = jax.random.split(key, 3)
    x = jax.random.normal(kx, (B, N, dim), jnp.float32)
    w_qkv, w_out, b_out = init_params(kp, dim, heads, dim_head)

    # Parameter prep (scale folding / layout) done once, outside the call path.
    params = prepare_attention_params(w_qkv, w_out, b_out, heads=heads)

    out = jax.block_until_ready(attention(x, params, heads=heads))
    ref = attention_ref(x, w_qkv, w_out, b_out, heads=heads)
    assert out.shape == (B, N, dim)
    assert jnp.allclose(out, ref, atol=2e-4, rtol=2e-4), (
        f"f32 mismatch, max abs err = {float(jnp.max(jnp.abs(out - ref)))}")

    # Exercise the query-tile grid axis (grid = (B, N // q_block) = (2, 2)).
    N2 = 16
    x2 = jax.random.normal(kx2, (B, N2, dim), jnp.float32)
    out2 = jax.block_until_ready(attention(x2, params, heads=heads, q_block=8))
    ref2 = attention_ref(x2, w_qkv, w_out, b_out, heads=heads)
    assert jnp.allclose(out2, ref2, atol=2e-4, rtol=2e-4), (
        f"q-tiled mismatch, max abs err = {float(jnp.max(jnp.abs(out2 - ref2)))}")

    # bf16 MXU path (f32 accumulation) — loose tolerance.
    params_bf16 = prepare_attention_params(w_qkv, w_out, b_out, heads=heads,
                                           compute_dtype=jnp.bfloat16)
    out3 = jax.block_until_ready(
        attention(x2, params_bf16, heads=heads, compute_dtype=jnp.bfloat16))
    assert jnp.allclose(out3.astype(jnp.float32), ref2, atol=1e-1), (
        "bf16 mismatch, max abs err = "
        f"{float(jnp.max(jnp.abs(out3.astype(jnp.float32) - ref2)))}")

    print("KERNEL_OK")
</pallas_src>

<mosaic_0001>
module attributes {stable_mosaic.version = 11 : i64} {
  func.func @_attention_kernel(%arg0: i32, %arg1: i32, %arg2: memref<8x32xf32, #tpu.memory_space<vmem>>, %arg3: memref<8x32xf32, #tpu.memory_space<vmem>>, %arg4: memref<32x768xf32, #tpu.memory_space<vmem>>, %arg5: memref<256x32xf32, #tpu.memory_space<vmem>>, %arg6: memref<1x32xf32, #tpu.memory_space<vmem>>, %arg7: memref<8x32xf32, #tpu.memory_space<vmem>>, %arg8: memref<8x256xf32, #tpu.memory_space<vmem>>) attributes {dimension_semantics = [#tpu.dimension_semantics<parallel>, #tpu.dimension_semantics<parallel>], iteration_bounds = array<i64: 2, 1>, scalar_prefetch = 0 : i64, scratch_operands = 1 : i64, tpu.core_type = #tpu.core_type<tc>, window_params = [{transform_indices = @transform_0, window_bounds = array<i64: 8, 32>}, {transform_indices = @transform_1, window_bounds = array<i64: 8, 32>}, {pipeline_mode = #tpu.pipeline_mode<synchronous>, transform_indices = @transform_2, window_bounds = array<i64: 32, 768>}, {pipeline_mode = #tpu.pipeline_mode<synchronous>, transform_indices = @transform_3, window_bounds = array<i64: 256, 32>}, {pipeline_mode = #tpu.pipeline_mode<synchronous>, transform_indices = @transform_4, window_bounds = array<i64: 1, 32>}, {transform_indices = @transform_5, window_bounds = array<i64: 8, 32>}]} {
    %c0 = arith.constant 0 : index
    %c0_0 = arith.constant 0 : index
    %0 = vector.load %arg2[%c0, %c0_0] : memref<8x32xf32, #tpu.memory_space<vmem>>, vector<8x32xf32>
    %c0_1 = arith.constant 0 : index
    %c0_2 = arith.constant 0 : index
    %1 = vector.load %arg3[%c0_1, %c0_2] : memref<8x32xf32, #tpu.memory_space<vmem>>, vector<8x32xf32>
    %c0_3 = arith.constant 0 : index
    %c0_4 = arith.constant 0 : index
    %2 = vector.load %arg4[%c0_3, %c0_4] : memref<32x768xf32, #tpu.memory_space<vmem>>, vector<32x256xf32>
    %cst = arith.constant dense<0.000000e+00> : vector<8x256xf32>
    %3 = tpu.matmul %0, %2, %cst {dimension_numbers = #tpu.dot_dimension_numbers<[1], [0], [0], [1], [0, 0, 1, 1], [], []>} : vector<8x32xf32>, vector<32x256xf32>, vector<8x256xf32> -> vector<8x256xf32>
    %c0_5 = arith.constant 0 : index
    %c256 = arith.constant 256 : index
    %4 = vector.load %arg4[%c0_5, %c256] : memref<32x768xf32, #tpu.memory_space<vmem>>, vector<32x512xf32>
    %cst_6 = arith.constant dense<0.000000e+00> : vector<8x512xf32>
    %5 = tpu.matmul %1, %4, %cst_6 {dimension_numbers = #tpu.dot_dimension_numbers<[1], [0], [0], [1], [0, 0, 1, 1], [], []>} : vector<8x32xf32>, vector<32x512xf32>, vector<8x512xf32> -> vector<8x512xf32>
    %6 = vector.extract_strided_slice %5 {offsets = [0, 0], sizes = [8, 256], strides = [1, 1]} : vector<8x512xf32> to vector<8x256xf32>
    %7 = vector.extract_strided_slice %5 {offsets = [0, 256], sizes = [8, 256], strides = [1, 1]} : vector<8x512xf32> to vector<8x256xf32>
    %8 = vector.extract_strided_slice %3 {offsets = [0, 0], sizes = [8, 32], strides = [1, 1]} : vector<8x256xf32> to vector<8x32xf32>
    %9 = vector.extract_strided_slice %6 {offsets = [0, 0], sizes = [8, 32], strides = [1, 1]} : vector<8x256xf32> to vector<8x32xf32>
    %cst_7 = arith.constant dense<0.000000e+00> : vector<8x8xf32>
    %10 = tpu.matmul %8, %9, %cst_7 {dimension_numbers = #tpu.dot_dimension_numbers<[1], [1], [0], [0], [0, 0, 1, 0], [], []>} : vector<8x32xf32>, vector<8x32xf32>, vector<8x8xf32> -> vector<8x8xf32>
    %cst_8 = arith.constant dense<0xFF800000> : vector<8xf32>
    %11 = vector.multi_reduction <maximumf>, %10, %cst_8 [1] : vector<8x8xf32> to vector<8xf32>
    %12 = vector.shape_cast %11 : vector<8xf32> to vector<8x1xf32>
    %13 = vector.broadcast %12 : vector<8x1xf32> to vector<8x8xf32>
    %14 = arith.subf %10, %13 : vector<8x8xf32>
    %15 = math.exp %14 : vector<8x8xf32>
    %cst_9 = arith.constant dense<0.000000e+00> : vector<8xf32>
    %16 = vector.multi_reduction <add>, %15, %cst_9 [1] : vector<8x8xf32> to vector<8xf32>
    %17 = vector.shape_cast %16 : vector<8xf32> to vector<8x1xf32>
    %18 = vector.extract_strided_slice %7 {offsets = [0, 0], sizes = [8, 32], strides = [1, 1]} : vector<8x256xf32> to vector<8x32xf32>
    %cst_10 = arith.constant dense<0.000000e+00> : vector<8x32xf32>
    %19 = tpu.matmul %15, %18, %cst_10 {dimension_numbers = #tpu.dot_dimension_numbers<[1], [0], [0], [1], [0, 0, 1, 1], [], []>} : vector<8x8xf32>, vector<8x32xf32>, vector<8x32xf32> -> vector<8x32xf32>
    %20 = tpu.reciprocal %17 : vector<8x1xf32> -> vector<8x1xf32>
    %21 = vector.broadcast %20 : vector<8x1xf32> to vector<8x32xf32>
    %22 = arith.mulf %19, %21 : vector<8x32xf32>
    %c0_11 = arith.constant 0 : index
    %c0_12 = arith.constant 0 : index
    %23 = vector.load %arg8[%c0_11, %c0_12] : memref<8x256xf32, #tpu.memory_space<vmem>>, vector<8x32xf32>
    tpu.vector_store %arg8[%c0_11, %c0_12], %22 {strides = array<i32>} : memref<8x256xf32, #tpu.memory_space<vmem>>, vector<8x32xf32>,
    %24 = vector.extract_strided_slice %3 {offsets = [0, 32], sizes = [8, 32], strides = [1, 1]} : vector<8x256xf32> to vector<8x32xf32>
    %25 = vector.extract_strided_slice %6 {offsets = [0, 32], sizes = [8, 32], strides = [1, 1]} : vector<8x256xf32> to vector<8x32xf32>
    %cst_13 = arith.constant dense<0.000000e+00> : vector<8x8xf32>
    %26 = tpu.matmul %24, %25, %cst_13 {dimension_numbers = #tpu.dot_dimension_numbers<[1], [1], [0], [0], [0, 0, 1, 0], [], []>} : vector<8x32xf32>, vector<8x32xf32>, vector<8x8xf32> -> vector<8x8xf32>
    %cst_14 = arith.constant dense<0xFF800000> : vector<8xf32>
    %27 = vector.multi_reduction <maximumf>, %26, %cst_14 [1] : vector<8x8xf32> to vector<8xf32>
    %28 = vector.shape_cast %27 : vector<8xf32> to vector<8x1xf32>
    %29 = vector.broadcast %28 : vector<8x1xf32> to vector<8x8xf32>
    %30 = arith.subf %26, %29 : vector<8x8xf32>
    %31 = math.exp %30 : vector<8x8xf32>
    %cst_15 = arith.constant dense<0.000000e+00> : vector<8xf32>
    %32 = vector.multi_reduction <add>, %31, %cst_15 [1] : vector<8x8xf32> to vector<8xf32>
    %33 = vector.shape_cast %32 : vector<8xf32> to vector<8x1xf32>
    %34 = vector.extract_strided_slice %7 {offsets = [0, 32], sizes = [8, 32], strides = [1, 1]} : vector<8x256xf32> to vector<8x32xf32>
    %cst_16 = arith.constant dense<0.000000e+00> : vector<8x32xf32>
    %35 = tpu.matmul %31, %34, %cst_16 {dimension_numbers = #tpu.dot_dimension_numbers<[1], [0], [0], [1], [0, 0, 1, 1], [], []>} : vector<8x8xf32>, vector<8x32xf32>, vector<8x32xf32> -> vector<8x32xf32>
    %36 = tpu.reciprocal %33 : vector<8x1xf32> -> vector<8x1xf32>
    %37 = vector.broadcast %36 : vector<8x1xf32> to vector<8x32xf32>
    %38 = arith.mulf %35, %37 : vector<8x32xf32>
    %c0_17 = arith.constant 0 : index
    %c32 = arith.constant 32 : index
    %39 = vector.load %arg8[%c0_17, %c32] : memref<8x256xf32, #tpu.memory_space<vmem>>, vector<8x32xf32>
    tpu.vector_store %arg8[%c0_17, %c32], %38 {strides = array<i32>} : memref<8x256xf32, #tpu.memory_space<vmem>>, vector<8x32xf32>,
    %40 = vector.extract_strided_slice %3 {offsets = [0, 64], sizes = [8, 32], strides = [1, 1]} : vector<8x256xf32> to vector<8x32xf32>
    %41 = vector.extract_strided_slice %6 {offsets = [0, 64], sizes = [8, 32], strides = [1, 1]} : vector<8x256xf32> to vector<8x32xf32>
    %cst_18 = arith.constant dense<0.000000e+00> : vector<8x8xf32>
    %42 = tpu.matmul %40, %41, %cst_18 {dimension_numbers = #tpu.dot_dimension_numbers<[1], [1], [0], [0], [0, 0, 1, 0], [], []>} : vector<8x32xf32>, vector<8x32xf32>, vector<8x8xf32> -> vector<8x8xf32>
    %cst_19 = arith.constant dense<0xFF800000> : vector<8xf32>
    %43 = vector.multi_reduction <maximumf>, %42, %cst_19 [1] : vector<8x8xf32> to vector<8xf32>
    %44 = vector.shape_cast %43 : vector<8xf32> to vector<8x1xf32>
    %45 = vector.broadcast %44 : vector<8x1xf32> to vector<8x8xf32>
    %46 = arith.subf %42, %45 : vector<8x8xf32>
    %47 = math.exp %46 : vector<8x8xf32>
    %cst_20 = arith.constant dense<0.000000e+00> : vector<8xf32>
    %48 = vector.multi_reduction <add>, %47, %cst_20 [1] : vector<8x8xf32> to vector<8xf32>
    %49 = vector.shape_cast %48 : vector<8xf32> to vector<8x1xf32>
    %50 = vector.extract_strided_slice %7 {offsets = [0, 64], sizes = [8, 32], strides = [1, 1]} : vector<8x256xf32> to vector<8x32xf32>
    %cst_21 = arith.constant dense<0.000000e+00> : vector<8x32xf32>
    %51 = tpu.matmul %47, %50, %cst_21 {dimension_numbers = #tpu.dot_dimension_numbers<[1], [0], [0], [1], [0, 0, 1, 1], [], []>} : vector<8x8xf32>, vector<8x32xf32>, vector<8x32xf32> -> vector<8x32xf32>
    %52 = tpu.reciprocal %49 : vector<8x1xf32> -> vector<8x1xf32>
    %53 = vector.broadcast %52 : vector<8x1xf32> to vector<8x32xf32>
    %54 = arith.mulf %51, %53 : vector<8x32xf32>
    %c0_22 = arith.constant 0 : index
    %c64 = arith.constant 64 : index
    %55 = vector.load %arg8[%c0_22, %c64] : memref<8x256xf32, #tpu.memory_space<vmem>>, vector<8x32xf32>
    tpu.vector_store %arg8[%c0_22, %c64], %54 {strides = array<i32>} : memref<8x256xf32, #tpu.memory_space<vmem>>, vector<8x32xf32>,
    %56 = vector.extract_strided_slice %3 {offsets = [0, 96], sizes = [8, 32], strides = [1, 1]} : vector<8x256xf32> to vector<8x32xf32>
    %57 = vector.extract_strided_slice %6 {offsets = [0, 96], sizes = [8, 32], strides = [1, 1]} : vector<8x256xf32> to vector<8x32xf32>
    %cst_23 = arith.constant dense<0.000000e+00> : vector<8x8xf32>
    %58 = tpu.matmul %56, %57, %cst_23 {dimension_numbers = #tpu.dot_dimension_numbers<[1], [1], [0], [0], [0, 0, 1, 0], [], []>} : vector<8x32xf32>, vector<8x32xf32>, vector<8x8xf32> -> vector<8x8xf32>
    %cst_24 = arith.constant dense<0xFF800000> : vector<8xf32>
    %59 = vector.multi_reduction <maximumf>, %58, %cst_24 [1] : vector<8x8xf32> to vector<8xf32>
    %60 = vector.shape_cast %59 : vector<8xf32> to vector<8x1xf32>
    %61 = vector.broadcast %60 : vector<8x1xf32> to vector<8x8xf32>
    %62 = arith.subf %58, %61 : vector<8x8xf32>
    %63 = math.exp %62 : vector<8x8xf32>
    %cst_25 = arith.constant dense<0.000000e+00> : vector<8xf32>
    %64 = vector.multi_reduction <add>, %63, %cst_25 [1] : vector<8x8xf32> to vector<8xf32>
    %65 = vector.shape_cast %64 : vector<8xf32> to vector<8x1xf32>
    %66 = vector.extract_strided_slice %7 {offsets = [0, 96], sizes = [8, 32], strides = [1, 1]} : vector<8x256xf32> to vector<8x32xf32>
    %cst_26 = arith.constant dense<0.000000e+00> : vector<8x32xf32>
    %67 = tpu.matmul %63, %66, %cst_26 {dimension_numbers = #tpu.dot_dimension_numbers<[1], [0], [0], [1], [0, 0, 1, 1], [], []>} : vector<8x8xf32>, vector<8x32xf32>, vector<8x32xf32> -> vector<8x32xf32>
    %68 = tpu.reciprocal %65 : vector<8x1xf32> -> vector<8x1xf32>
    %69 = vector.broadcast %68 : vector<8x1xf32> to vector<8x32xf32>
    %70 = arith.mulf %67, %69 : vector<8x32xf32>
    %c0_27 = arith.constant 0 : index
    %c96 = arith.constant 96 : index
    %71 = vector.load %arg8[%c0_27, %c96] : memref<8x256xf32, #tpu.memory_space<vmem>>, vector<8x32xf32>
    tpu.vector_store %arg8[%c0_27, %c96], %70 {strides = array<i32>} : memref<8x256xf32, #tpu.memory_space<vmem>>, vector<8x32xf32>,
    %72 = vector.extract_strided_slice %3 {offsets = [0, 128], sizes = [8, 32], strides = [1, 1]} : vector<8x256xf32> to vector<8x32xf32>
    %73 = vector.extract_strided_slice %6 {offsets = [0, 128], sizes = [8, 32], strides = [1, 1]} : vector<8x256xf32> to vector<8x32xf32>
    %cst_28 = arith.constant dense<0.000000e+00> : vector<8x8xf32>
    %74 = tpu.matmul %72, %73, %cst_28 {dimension_numbers = #tpu.dot_dimension_numbers<[1], [1], [0], [0], [0, 0, 1, 0], [], []>} : vector<8x32xf32>, vector<8x32xf32>, vector<8x8xf32> -> vector<8x8xf32>
    %cst_29 = arith.constant dense<0xFF800000> : vector<8xf32>
    %75 = vector.multi_reduction <maximumf>, %74, %cst_29 [1] : vector<8x8xf32> to vector<8xf32>
    %76 = vector.shape_cast %75 : vector<8xf32> to vector<8x1xf32>
    %77 = vector.broadcast %76 : vector<8x1xf32> to vector<8x8xf32>
    %78 = arith.subf %74, %77 : vector<8x8xf32>
    %79 = math.exp %78 : vector<8x8xf32>
    %cst_30 = arith.constant dense<0.000000e+00> : vector<8xf32>
    %80 = vector.multi_reduction <add>, %79, %cst_30 [1] : vector<8x8xf32> to vector<8xf32>
    %81 = vector.shape_cast %80 : vector<8xf32> to vector<8x1xf32>
    %82 = vector.extract_strided_slice %7 {offsets = [0, 128], sizes = [8, 32], strides = [1, 1]} : vector<8x256xf32> to vector<8x32xf32>
    %cst_31 = arith.constant dense<0.000000e+00> : vector<8x32xf32>
    %83 = tpu.matmul %79, %82, %cst_31 {dimension_numbers = #tpu.dot_dimension_numbers<[1], [0], [0], [1], [0, 0, 1, 1], [], []>} : vector<8x8xf32>, vector<8x32xf32>, vector<8x32xf32> -> vector<8x32xf32>
    %84 = tpu.reciprocal %81 : vector<8x1xf32> -> vector<8x1xf32>
    %85 = vector.broadcast %84 : vector<8x1xf32> to vector<8x32xf32>
    %86 = arith.mulf %83, %85 : vector<8x32xf32>
    %c0_32 = arith.constant 0 : index
    %c128 = arith.constant 128 : index
    %87 = vector.load %arg8[%c0_32, %c128] : memref<8x256xf32, #tpu.memory_space<vmem>>, vector<8x32xf32>
    tpu.vector_store %arg8[%c0_32, %c128], %86 {strides = array<i32>} : memref<8x256xf32, #tpu.memory_space<vmem>>, vector<8x32xf32>,
    %88 = vector.extract_strided_slice %3 {offsets = [0, 160], sizes = [8, 32], strides = [1, 1]} : vector<8x256xf32> to vector<8x32xf32>
    %89 = vector.extract_strided_slice %6 {offsets = [0, 160], sizes = [8, 32], strides = [1, 1]} : vector<8x256xf32> to vector<8x32xf32>
    %cst_33 = arith.constant dense<0.000000e+00> : vector<8x8xf32>
    %90 = tpu.matmul %88, %89, %cst_33 {dimension_numbers = #tpu.dot_dimension_numbers<[1], [1], [0], [0], [0, 0, 1, 0], [], []>} : vector<8x32xf32>, vector<8x32xf32>, vector<8x8xf32> -> vector<8x8xf32>
    %cst_34 = arith.constant dense<0xFF800000> : vector<8xf32>
    %91 = vector.multi_reduction <maximumf>, %90, %cst_34 [1] : vector<8x8xf32> to vector<8xf32>
    %92 = vector.shape_cast %91 : vector<8xf32> to vector<8x1xf32>
    %93 = vector.broadcast %92 : vector<8x1xf32> to vector<8x8xf32>
    %94 = arith.subf %90, %93 : vector<8x8xf32>
    %95 = math.exp %94 : vector<8x8xf32>
    %cst_35 = arith.constant dense<0.000000e+00> : vector<8xf32>
    %96 = vector.multi_reduction <add>, %95, %cst_35 [1] : vector<8x8xf32> to vector<8xf32>
    %97 = vector.shape_cast %96 : vector<8xf32> to vector<8x1xf32>
    %98 = vector.extract_strided_slice %7 {offsets = [0, 160], sizes = [8, 32], strides = [1, 1]} : vector<8x256xf32> to vector<8x32xf32>
    %cst_36 = arith.constant dense<0.000000e+00> : vector<8x32xf32>
    %99 = tpu.matmul %95, %98, %cst_36 {dimension_numbers = #tpu.dot_dimension_numbers<[1], [0], [0], [1], [0, 0, 1, 1], [], []>} : vector<8x8xf32>, vector<8x32xf32>, vector<8x32xf32> -> vector<8x32xf32>
    %100 = tpu.reciprocal %97 : vector<8x1xf32> -> vector<8x1xf32>
    %101 = vector.broadcast %100 : vector<8x1xf32> to vector<8x32xf32>
    %102 = arith.mulf %99, %101 : vector<8x32xf32>
    %c0_37 = arith.constant 0 : index
    %c160 = arith.constant 160 : index
    %103 = vector.load %arg8[%c0_37, %c160] : memref<8x256xf32, #tpu.memory_space<vmem>>, vector<8x32xf32>
    tpu.vector_store %arg8[%c0_37, %c160], %102 {strides = array<i32>} : memref<8x256xf32, #tpu.memory_space<vmem>>, vector<8x32xf32>,
    %104 = vector.extract_strided_slice %3 {offsets = [0, 192], sizes = [8, 32], strides = [1, 1]} : vector<8x256xf32> to vector<8x32xf32>
    %105 = vector.extract_strided_slice %6 {offsets = [0, 192], sizes = [8, 32], strides = [1, 1]} : vector<8x256xf32> to vector<8x32xf32>
    %cst_38 = arith.constant dense<0.000000e+00> : vector<8x8xf32>
    %106 = tpu.matmul %104, %105, %cst_38 {dimension_numbers = #tpu.dot_dimension_numbers<[1], [1], [0], [0], [0, 0, 1, 0], [], []>} : vector<8x32xf32>, vector<8x32xf32>, vector<8x8xf32> -> vector<8x8xf32>
    %cst_39 = arith.constant dense<0xFF800000> : vector<8xf32>
    %107 = vector.multi_reduction <maximumf>, %106, %cst_39 [1] : vector<8x8xf32> to vector<8xf32>
    %108 = vector.shape_cast %107 : vector<8xf32> to vector<8x1xf32>
    %109 = vector.broadcast %108 : vector<8x1xf32> to vector<8x8xf32>
    %110 = arith.subf %106, %109 : vector<8x8xf32>
    %111 = math.exp %110 : vector<8x8xf32>
    %cst_40 = arith.constant dense<0.000000e+00> : vector<8xf32>
    %112 = vector.multi_reduction <add>, %111, %cst_40 [1] : vector<8x8xf32> to vector<8xf32>
    %113 = vector.shape_cast %112 : vector<8xf32> to vector<8x1xf32>
    %114 = vector.extract_strided_slice %7 {offsets = [0, 192], sizes = [8, 32], strides = [1, 1]} : vector<8x256xf32> to vector<8x32xf32>
    %cst_41 = arith.constant dense<0.000000e+00> : vector<8x32xf32>
    %115 = tpu.matmul %111, %114, %cst_41 {dimension_numbers = #tpu.dot_dimension_numbers<[1], [0], [0], [1], [0, 0, 1, 1], [], []>} : vector<8x8xf32>, vector<8x32xf32>, vector<8x32xf32> -> vector<8x32xf32>
    %116 = tpu.reciprocal %113 : vector<8x1xf32> -> vector<8x1xf32>
    %117 = vector.broadcast %116 : vector<8x1xf32> to vector<8x32xf32>
    %118 = arith.mulf %115, %117 : vector<8x32xf32>
    %c0_42 = arith.constant 0 : index
    %c192 = arith.constant 192 : index
    %119 = vector.load %arg8[%c0_42, %c192] : memref<8x256xf32, #tpu.memory_space<vmem>>, vector<8x32xf32>
    tpu.vector_store %arg8[%c0_42, %c192], %118 {strides = array<i32>} : memref<8x256xf32, #tpu.memory_space<vmem>>, vector<8x32xf32>,
    %120 = vector.extract_strided_slice %3 {offsets = [0, 224], sizes = [8, 32], strides = [1, 1]} : vector<8x256xf32> to vector<8x32xf32>
    %121 = vector.extract_strided_slice %6 {offsets = [0, 224], sizes = [8, 32], strides = [1, 1]} : vector<8x256xf32> to vector<8x32xf32>
    %cst_43 = arith.constant dense<0.000000e+00> : vector<8x8xf32>
    %122 = tpu.matmul %120, %121, %cst_43 {dimension_numbers = #tpu.dot_dimension_numbers<[1], [1], [0], [0], [0, 0, 1, 0], [], []>} : vector<8x32xf32>, vector<8x32xf32>, vector<8x8xf32> -> vector<8x8xf32>
    %cst_44 = arith.constant dense<0xFF800000> : vector<8xf32>
    %123 = vector.multi_reduction <maximumf>, %122, %cst_44 [1] : vector<8x8xf32> to vector<8xf32>
    %124 = vector.shape_cast %123 : vector<8xf32> to vector<8x1xf32>
    %125 = vector.broadcast %124 : vector<8x1xf32> to vector<8x8xf32>
    %126 = arith.subf %122, %125 : vector<8x8xf32>
    %127 = math.exp %126 : vector<8x8xf32>
    %cst_45 = arith.constant dense<0.000000e+00> : vector<8xf32>
    %128 = vector.multi_reduction <add>, %127, %cst_45 [1] : vector<8x8xf32> to vector<8xf32>
    %129 = vector.shape_cast %128 : vector<8xf32> to vector<8x1xf32>
    %130 = vector.extract_strided_slice %7 {offsets = [0, 224], sizes = [8, 32], strides = [1, 1]} : vector<8x256xf32> to vector<8x32xf32>
    %cst_46 = arith.constant dense<0.000000e+00> : vector<8x32xf32>
    %131 = tpu.matmul %127, %130, %cst_46 {dimension_numbers = #tpu.dot_dimension_numbers<[1], [0], [0], [1], [0, 0, 1, 1], [], []>} : vector<8x8xf32>, vector<8x32xf32>, vector<8x32xf32> -> vector<8x32xf32>
    %132 = tpu.reciprocal %129 : vector<8x1xf32> -> vector<8x1xf32>
    %133 = vector.broadcast %132 : vector<8x1xf32> to vector<8x32xf32>
    %134 = arith.mulf %131, %133 : vector<8x32xf32>
    %c0_47 = arith.constant 0 : index
    %c224 = arith.constant 224 : index
    %135 = vector.load %arg8[%c0_47, %c224] : memref<8x256xf32, #tpu.memory_space<vmem>>, vector<8x32xf32>
    tpu.vector_store %arg8[%c0_47, %c224], %134 {strides = array<i32>} : memref<8x256xf32, #tpu.memory_space<vmem>>, vector<8x32xf32>,
    %c0_48 = arith.constant 0 : index
    %c0_49 = arith.constant 0 : index
    %136 = vector.load %arg8[%c0_48, %c0_49] : memref<8x256xf32, #tpu.memory_space<vmem>>, vector<8x256xf32>
    %c0_50 = arith.constant 0 : index
    %c0_51 = arith.constant 0 : index
    %137 = vector.load %arg5[%c0_50, %c0_51] : memref<256x32xf32, #tpu.memory_space<vmem>>, vector<256x32xf32>
    %cst_52 = arith.constant dense<0.000000e+00> : vector<8x32xf32>
    %138 = tpu.matmul %136, %137, %cst_52 {dimension_numbers = #tpu.dot_dimension_numbers<[1], [0], [0], [1], [0, 0, 1, 1], [], []>} : vector<8x256xf32>, vector<256x32xf32>, vector<8x32xf32> -> vector<8x32xf32>
    %c0_53 = arith.constant 0 : index
    %c0_54 = arith.constant 0 : index
    %139 = vector.load %arg6[%c0_53, %c0_54] : memref<1x32xf32, #tpu.memory_space<vmem>>, vector<1x32xf32>
    %140 = vector.broadcast %139 : vector<1x32xf32> to vector<8x32xf32>
    %141 = arith.addf %138, %140 : vector<8x32xf32>
    %c0_55 = arith.constant 0 : index
    %c0_56 = arith.constant 0 : index
    %142 = vector.load %arg7[%c0_55, %c0_56] : memref<8x32xf32, #tpu.memory_space<vmem>>, vector<8x32xf32>
    tpu.vector_store %arg7[%c0_55, %c0_56], %141 {strides = array<i32>} : memref<8x32xf32, #tpu.memory_space<vmem>>, vector<8x32xf32>,
    return
  }
  func.func @transform_0(%arg0: i32, %arg1: i32) -> (i32, i32) {
    %c1_i32 = arith.constant 1 : i32
    %0 = arith.muli %arg0, %c1_i32 : i32
    %1 = arith.addi %0, %arg1 : i32
    %c0_i32 = arith.constant 0 : i32
    %c0_i32_0 = arith.constant 0 : i32
    return %1, %c0_i32 : i32, i32
  }
  func.func @transform_1(%arg0: i32, %arg1: i32) -> (i32, i32) {
    %c0_i32 = arith.constant 0 : i32
    %c0_i32_0 = arith.constant 0 : i32
    return %arg0, %c0_i32 : i32, i32
  }
  func.func @transform_2(%arg0: i32, %arg1: i32) -> (i32, i32) {
    %c0_i32 = arith.constant 0 : i32
    %c0_i32_0 = arith.constant 0 : i32
    %c0_i32_1 = arith.constant 0 : i32
    return %c0_i32, %c0_i32_0 : i32, i32
  }
  func.func @transform_3(%arg0: i32, %arg1: i32) -> (i32, i32) {
    %c0_i32 = arith.constant 0 : i32
    %c0_i32_0 = arith.constant 0 : i32
    %c0_i32_1 = arith.constant 0 : i32
    return %c0_i32, %c0_i32_0 : i32, i32
  }
  func.func @transform_4(%arg0: i32, %arg1: i32) -> (i32, i32) {
    %c0_i32 = arith.constant 0 : i32
    %c0_i32_0 = arith.constant 0 : i32
    %c0_i32_1 = arith.constant 0 : i32
    return %c0_i32, %c0_i32_0 : i32, i32
  }
  func.func @transform_5(%arg0: i32, %arg1: i32) -> (i32, i32) {
    %c1_i32 = arith.constant 1 : i32
    %0 = arith.muli %arg0, %c1_i32 : i32
    %1 = arith.addi %0, %arg1 : i32
    %c0_i32 = arith.constant 0 : i32
    %c0_i32_0 = arith.constant 0 : i32
    return %1, %c0_i32 : i32, i32
  }
}

</mosaic_0001>

<llo_original>
// kernel: tpu_custom_call.1
$region0: #{tpu_custom_call.1}
  #allocation0 [shape = 'u32[]', space=smem, size = 0x4, offset = 0x4, fixed_abs, tag = 'smem constant byte address 0x4 - core index']
  #allocation1 [shape = 'u32[144,128]{1,0:T(1,128)}', space=vmem, size = 0x12000, scoped, tag = 'internal scratch']
  #allocation2 [shape = 'f32[8,256]{1,0:T(8,128)}', space=vmem, size = 0x2000, scoped, tag = 'scratch operand']
  %s0 = inlined_call_operand.vmem [shape: f32[16,32], index: 0, kind: input, shape index: {}]
  %s1 = inlined_call_operand.vmem [shape: f32[16,32], index: 1, kind: input, shape index: {}]
  %s2 = inlined_call_operand.vmem [shape: f32[32,768], index: 2, kind: input, shape index: {}]
  %s3 = inlined_call_operand.vmem [shape: f32[256,32], index: 3, kind: input, shape index: {}]
  %s4 = inlined_call_operand.vmem [shape: f32[1,32], index: 4, kind: input, shape index: {}]
  %s5 = inlined_call_operand.hbm [shape: f32[16,32], index: 5, kind: output, shape index: {}]
  %s6 = sld [smem:[#allocation0]]
  $region53: #{tpu_custom_call.1} parent=0
    _
  %s8 = ssub.s32 1, %s6
  %s9 = scalar_select 0, %s8, %s6
  $region1: #{tpu_custom_call.1} parent=0
    #allocation3 [shape = 'u8[8192]{0}', space=vmem, size = 0x2000, scoped, tag = 'output window, operand 0']
    #allocation4 [shape = 's32[2]{0}', space=sflag, size = 0x8, scoped, tag = 'scoped memory for tpu_custom_call.1']
    %10 = vsyncpa [#allocation4], 0
    %s11 = scalar_lea.sflag [#allocation4], 1
    %12 = vsyncpa %s11, 0
    loop: start=0, step=1, limit=4
    $region2: #{tpu_custom_call.1} parent=1 // loop_pre_header
      _
    $region3: #{tpu_custom_call.1} parent=1 // loop_header
      %s14 = sphi 0, %s18
      %p15 = scmp.ge.s32.totalorder %s14, 4
      %s21 = sphi 0, %s33
      %s22 = sphi 0, %s29
      %s23 = sphi 0, %s21
      %s24 = sphi 0, %s22
      %s25 = sphi 0, %s23
      %s26 = sphi 0, %s24
      %s38 = sphi 0, %s40
      %s41 = sphi 0, %s38
      %s42 = sphi 0, %s41
      %s58 = sphi 0, %s42
      %s64 = sphi 0, %s66
      %s67 = sphi 0, %s64
      %s68 = sphi 0, %s67
      %s84 = sphi 0, %s68
      %s88 = sphi 0, %s88
      %s90 = sphi 0, %s88
      %s91 = sphi 0, %s90
      %s105 = sphi 0, %s91
      %s109 = sphi 0, %s109
      %s111 = sphi 0, %s109
      %s112 = sphi 0, %s111
      %s126 = sphi 0, %s112
      %s130 = sphi 0, %s130
      %s132 = sphi 0, %s130
      %s133 = sphi 0, %s132
      %s147 = sphi 0, %s133
      %s155 = sphi 0, %s157
      %s158 = sphi 0, %s155
      %s159 = sphi 0, %s158
      %s175 = sphi 0, %s159
    $region4: #{tpu_custom_call.1} parent=1 // loop_header_branch
      %17 = sbr.rel (%p15) target = $region8
    $region5: #{tpu_custom_call.1} parent=1 // loop_body
      %s19 = ssub.s32 %s14, 1
      %s20 = ssub.s32 %s14, 2
      %s27 = sadd.s32 1, %s22
      %p28 = scmp.ge.s32.totalorder %s27, 1
      %s29 = scalar_select %p28, 0, %s27
      %s30 = sadd.s32 1, %s21
      %s31 = scalar_select %p28, %s30, %s21
      %p32 = scmp.ge.s32.totalorder %s31, 2
      %s33 = scalar_select %p32, 0, %s31
      %s34 = sadd.s32 %s21, %s22
      %s35 = sadd.s32 %s33, %s29
      %s36 = ssub.s32 %s34, %s35
      %p37 = scmp.eq.s32.totalorder %s36, 0
      %s39 = sadd.s32 %s38, 1
      %s40 = scalar_select %p37, %s38, %s39
      %p43 = pneg %p37
      %p44 = scmp.eq.s32.totalorder %s14, 1
      %p45 = por %p43, %p44
      %p46 = scmp.ne.s32.totalorder %s38, %s41
      %p47 = scmp.eq.s32.totalorder %s14, 0
      %p48 = por %p46, %p47
      %p49 = scmp.ne.s32.totalorder %s38, %s41
      %p50 = scmp.eq.s32.totalorder %s19, 1
      %p51 = por %p49, %p50
      %p52 = scmp.ne.s32.totalorder %s41, %s42
      %p53 = scmp.eq.s32.totalorder %s19, 0
      %p54 = por %p52, %p53
      %p55 = scmp.ne.s32.totalorder %s41, %s42
      %p56 = scmp.eq.s32.totalorder %s20, 1
      %p57 = por %p55, %p56
      %p59 = scmp.ne.s32.totalorder %s42, %s58
      %p60 = scmp.eq.s32.totalorder %s20, 0
      %p61 = por %p59, %p60
      %s62 = ssub.s32 %s21, %s33
      %p63 = scmp.eq.s32.totalorder %s62, 0
      %s65 = sadd.s32 %s64, 1
      %s66 = scalar_select %p63, %s64, %s65
      %p69 = pneg %p63
      %p70 = scmp.eq.s32.totalorder %s14, 1
      %p71 = por %p69, %p70
      %p72 = scmp.ne.s32.totalorder %s64, %s67
      %p73 = scmp.eq.s32.totalorder %s14, 0
      %p74 = por %p72, %p73
      %p75 = scmp.ne.s32.totalorder %s64, %s67
      %p76 = scmp.eq.s32.totalorder %s19, 1
      %p77 = por %p75, %p76
      %p78 = scmp.ne.s32.totalorder %s67, %s68
      %p79 = scmp.eq.s32.totalorder %s19, 0
      %p80 = por %p78, %p79
      %p81 = scmp.ne.s32.totalorder %s67, %s68
      %p82 = scmp.eq.s32.totalorder %s20, 1
      %p83 = por %p81, %p82
      %p85 = scmp.ne.s32.totalorder %s68, %s84
      %p86 = scmp.eq.s32.totalorder %s20, 0
      %p87 = por %p85, %p86
      %s89 = sadd.s32 %s88, 1
      %p92 = scmp.eq.s32.totalorder %s14, 1
      %p93 = scmp.ne.s32.totalorder %s88, %s90
      %p94 = scmp.eq.s32.totalorder %s14, 0
      %p95 = por %p93, %p94
      %p96 = scmp.ne.s32.totalorder %s88, %s90
      %p97 = scmp.eq.s32.totalorder %s19, 1
      %p98 = por %p96, %p97
      %p99 = scmp.ne.s32.totalorder %s90, %s91
      %p100 = scmp.eq.s32.totalorder %s19, 0
      %p101 = por %p99, %p100
      %p102 = scmp.ne.s32.totalorder %s90, %s91
      %p103 = scmp.eq.s32.totalorder %s20, 1
      %p104 = por %p102, %p103
      %p106 = scmp.ne.s32.totalorder %s91, %s105
      %p107 = scmp.eq.s32.totalorder %s20, 0
      %p108 = por %p106, %p107
      %s110 = sadd.s32 %s109, 1
      %p113 = scmp.eq.s32.totalorder %s14, 1
      %p114 = scmp.ne.s32.totalorder %s109, %s111
      %p115 = scmp.eq.s32.totalorder %s14, 0
      %p116 = por %p114, %p115
      %p117 = scmp.ne.s32.totalorder %s109, %s111
      %p118 = scmp.eq.s32.totalorder %s19, 1
      %p119 = por %p117, %p118
      %p120 = scmp.ne.s32.totalorder %s111, %s112
      %p121 = scmp.eq.s32.totalorder %s19, 0
      %p122 = por %p120, %p121
      %p123 = scmp.ne.s32.totalorder %s111, %s112
      %p124 = scmp.eq.s32.totalorder %s20, 1
      %p125 = por %p123, %p124
      %p127 = scmp.ne.s32.totalorder %s112, %s126
      %p128 = scmp.eq.s32.totalorder %s20, 0
      %p129 = por %p127, %p128
      %s131 = sadd.s32 %s130, 1
      %p134 = scmp.eq.s32.totalorder %s14, 1
      %p135 = scmp.ne.s32.totalorder %s130, %s132
      %p136 = scmp.eq.s32.totalorder %s14, 0
      %p137 = por %p135, %p136
      %p138 = scmp.ne.s32.totalorder %s130, %s132
      %p139 = scmp.eq.s32.totalorder %s19, 1
      %p140 = por %p138, %p139
      %p141 = scmp.ne.s32.totalorder %s132, %s133
      %p142 = scmp.eq.s32.totalorder %s19, 0
      %p143 = por %p141, %p142
      %p144 = scmp.ne.s32.totalorder %s132, %s133
      %p145 = scmp.eq.s32.totalorder %s20, 1
      %p146 = por %p144, %p145
      %p148 = scmp.ne.s32.totalorder %s133, %s147
      %p149 = scmp.eq.s32.totalorder %s20, 0
      %p150 = por %p148, %p149
      %s151 = sadd.s32 %s21, %s22
      %s152 = sadd.s32 %s33, %s29
      %s153 = ssub.s32 %s151, %s152
      %p154 = scmp.eq.s32.totalorder %s153, 0
      %s156 = sadd.s32 %s155, 1
      %s157 = scalar_select %p154, %s155, %s156
      %p160 = pneg %p154
      %p161 = scmp.eq.s32.totalorder %s14, 1
      %p162 = por %p160, %p161
      %p163 = scmp.ne.s32.totalorder %s155, %s158
      %p164 = scmp.eq.s32.totalorder %s14, 0
      %p165 = por %p163, %p164
      %p166 = scmp.ne.s32.totalorder %s155, %s158
      %p167 = scmp.eq.s32.totalorder %s19, 1
      %p168 = por %p166, %p167
      %p169 = scmp.ne.s32.totalorder %s158, %s159
      %p170 = scmp.eq.s32.totalorder %s19, 0
      %p171 = por %p169, %p170
      %p172 = scmp.ne.s32.totalorder %s158, %s159
      %p173 = scmp.eq.s32.totalorder %s20, 1
      %p174 = por %p172, %p173
      %p176 = scmp.ne.s32.totalorder %s159, %s175
      %p177 = scmp.eq.s32.totalorder %s20, 0
      %p178 = por %p176, %p177
      %p179 = scmp.le.s32.totalorder 1, %s14
      %p180 = scmp.lt.s32.totalorder %s14, 3
      %p181 = pnand %p179, %p180
      %p182 = pneg %p181
      // Predicated region
      $region9: #{tpu_custom_call.1} parent=5 // pred_check
        _
      $region10: #{tpu_custom_call.1} parent=5 // pred_check_branch
        %184 = sbr.rel (%p181) target = $region12
      $region11: #{tpu_custom_call.1} parent=5 // pred_region
        %s185 = ssub.s32 %s14, 1
        // Predicated region
        $region13: #{tpu_custom_call.1} parent=11 // pred_check
          %p186 = pneg %p101
        $region14: #{tpu_custom_call.1} parent=11 // pred_check_branch
          %188 = sbr.rel (%p186) target = $region16
        $region15: #{tpu_custom_call.1} parent=11 // pred_region
          _
        $region16: #{tpu_custom_call.1} parent=11 // pred_fallthru
          _
        // Predicated region
        $region17: #{tpu_custom_call.1} parent=11 // pred_check
          %p189 = pneg %p122
        $region18: #{tpu_custom_call.1} parent=11 // pred_check_branch
          %191 = sbr.rel (%p189) target = $region20
        $region19: #{tpu_custom_call.1} parent=11 // pred_region
          _
        $region20: #{tpu_custom_call.1} parent=11 // pred_fallthru
          _
        // Predicated region
        $region21: #{tpu_custom_call.1} parent=11 // pred_check
          %p192 = pneg %p143
        $region22: #{tpu_custom_call.1} parent=11 // pred_check_branch
          %194 = sbr.rel (%p192) target = $region24
        $region23: #{tpu_custom_call.1} parent=11 // pred_region
          _
        $region24: #{tpu_custom_call.1} parent=11 // pred_fallthru
          _
      $region12: #{tpu_custom_call.1} parent=5 // pred_fallthru
        _
      %p195 = scmp.lt.s32.totalorder %s14, 2
      // Predicated region
      $region25: #{tpu_custom_call.1} parent=5 // pred_check
        %p196 = pneg %p195
      $region26: #{tpu_custom_call.1} parent=5 // pred_check_branch
        %198 = sbr.rel (%p196) target = $region28
      $region27: #{tpu_custom_call.1} parent=5 // pred_region
        // Predicated region
        $region29: #{tpu_custom_call.1} parent=27 // pred_check
          %p199 = pneg %p48
        $region30: #{tpu_custom_call.1} parent=27 // pred_check_branch
          %201 = sbr.rel (%p199) target = $region32
        $region31: #{tpu_custom_call.1} parent=27 // pred_region
          %s202 = sadd.s32 %s21, %s22
          %p203 = scmp.lt.s32.totalorder %s202, 1
          %s204 = scalar_select %p203, %s202, 1
          %s205 = smul.addr %s204, 8
          %s206 = scalar_lea.vmem %s0, %s205
          %s207 = sadd.s32 %s21, %s22
        $region32: #{tpu_custom_call.1} parent=27 // pred_fallthru
          _
        // Predicated region
        $region33: #{tpu_custom_call.1} parent=27 // pred_check
          %p208 = pneg %p74
        $region34: #{tpu_custom_call.1} parent=27 // pred_check_branch
          %210 = sbr.rel (%p208) target = $region36
        $region35: #{tpu_custom_call.1} parent=27 // pred_region
          %p211 = scmp.lt.s32.totalorder %s21, 1
          %s212 = scalar_select %p211, %s21, 1
          %s213 = smul.addr %s212, 8
          %s214 = scalar_lea.vmem %s1, %s213
        $region36: #{tpu_custom_call.1} parent=27 // pred_fallthru
          _
      $region28: #{tpu_custom_call.1} parent=5 // pred_fallthru
        _
      %p215 = scmp.le.s32.totalorder 1, %s14
      %p216 = scmp.lt.s32.totalorder %s14, 3
      %p217 = pnand %p215, %p216
      %p218 = pneg %p217
      // Predicated region
      $region37: #{tpu_custom_call.1} parent=5 // pred_check
        _
      $region38: #{tpu_custom_call.1} parent=5 // pred_check_branch
        %220 = sbr.rel (%p217) target = $region40
      $region39: #{tpu_custom_call.1} parent=5 // pred_region
        %s221 = ssub.s32 %s14, 1
        %s222 = sadd.s32 %s23, %s24
        %p223 = scmp.lt.s32.totalorder %s222, 1
        %s224 = scalar_select %p223, %s222, 1
        %s225 = smul.addr %s224, 8
        %s226 = scalar_lea.vmem %s0, %s225
        %p227 = pneg %p54
        %p228 = pneg %p51
        %p229 = scmp.lt.s32.totalorder %s23, 1
        %s230 = scalar_select %p229, %s23, 1
        %s231 = smul.addr %s230, 8
        %s232 = scalar_lea.vmem %s1, %s231
        %p233 = pneg %p80
        %p234 = pneg %p77
        %p235 = pneg %p101
        %p236 = pneg %p98
        %p237 = pneg %p122
        %p238 = pneg %p119
        %p239 = pneg %p143
        %p240 = pneg %p140
        %p241 = pneg %p171
        %p242 = pneg %p168
        %s243 = sand.u32 %s158, 1
        %s244 = scalar_lea.sflag [#allocation4], %s243
        %s245 = sand.u32 %s158, 1
        %s246 = smul.addr %s245, 8
        %s247 = scalar_lea.vmem [#allocation3], %s246
        %s248 = sadd.s32 %s23, %s24
        %p249 = scmp.lt.s32.totalorder %s248, 1
        %s250 = scalar_select %p249, %s248, 1
        %s251 = smul.addr %s250, 8
        %s252 = scalar_lea.vmem %s0, %s251
        %s253 = sadd.s32 %s23, %s24
        %p254 = scmp.lt.s32.totalorder %s23, 1
        %s255 = scalar_select %p254, %s23, 1
        %s256 = smul.addr %s255, 8
        %s257 = scalar_lea.vmem %s1, %s256
        %s258 = sadd.s32 %s23, %s24
        %v259 = vld [vmem:[%s252] sm:$0xff]
        %v260 = vld [vmem:[%s257] sm:$0xff]
        %v261 = vld [vmem:[%s2] sm:$0xff]
        %v262 = vld [vmem:[%s2 + $0x8] sm:$0xff]
        %v263 = vld [vmem:[%s2 + $0x30] sm:$0xff]
        %v264 = vld [vmem:[%s2 + $0x38] sm:$0xff]
        %v265 = vld [vmem:[%s2 + $0x60] sm:$0xff]
        %v266 = vld [vmem:[%s2 + $0x68] sm:$0xff]
        %v267 = vld [vmem:[%s2 + $0x90] sm:$0xff]
        %v268 = vld [vmem:[%s2 + $0x98] sm:$0xff]
        %vm269 = vcmask 261120
        %v271 = vsel %vm269, %v259, 0
        %273 = vmatprep.subr.mxu0 %v262
        %274 = vmatpush1.msra.mxu0 %v261
        %275 = vmatprep.subr.mxu0 %v264
        %276 = vmatpush1.msra.mxu0 %v263
        %277 = vmatprep.subr.mxu0 %v266
        %278 = vmatpush1.msra.mxu0 %v265
        %279 = vmatprep.subr.mxu0 %v268
        %280 = vmatpush1.msra.mxu0 %v267
        %281 = vmatprep.subr.mxu0 0.0
        %282 = vmatpush1.msra.mxu0 0.0
        %283 = vmatprep.subr.mxu0 0.0
        %284 = vmatpush1.msra.mxu0 0.0
        %285 = vmatprep.subr.mxu0 0.0
        %286 = vmatpush1.msra.mxu0 0.0
        %287 = vmatprep.subr.mxu0 0.0
        %288 = vmatpush1.msra.mxu0 0.0
        %289 = vmatprep.subr.mxu0 0.0
        %290 = vmatpush1.msra.mxu0 0.0
        %291 = vmatprep.subr.mxu0 0.0
        %292 = vmatpush1.msra.mxu0 0.0
        %293 = vmatprep.subr.mxu0 0.0
        %294 = vmatpush1.msra.mxu0 0.0
        %295 = vmatprep.subr.mxu0 0.0
        %296 = vmatpush1.msra.mxu0 0.0
        %297 = vmatprep.subr.mxu0 0.0
        %298 = vmatpush1.msra.mxu0 0.0
        %299 = vmatprep.subr.mxu0 0.0
        %300 = vmatpush1.msra.mxu0 0.0
        %301 = vmatprep.subr.mxu0 0.0
        %302 = vmatpush1.msra.mxu0 0.0
        %303 = vmatprep.subr.mxu0 0.0
        %304 = vmatpush1.msra.mxu0 0.0
        %305 = vmatprep.subr.mxu0 0.0
        %306 = vmatpush1.msra.mxu0 0.0
        %307 = vmatprep.subr.mxu0 0.0
        %308 = vmatpush1.msra.mxu0 0.0
        %309 = vmatprep.subr.mxu0 0.0
        %310 = vmatpush1.msra.mxu0 0.0
        %311 = vmatprep.subr.mxu0 0.0
        %312 = vmatpush1.msra.mxu0 0.0
        %313 = vmatprep.subr.mxu0 0.0
        %314 = vmatpush1.msra.mxu0 0.0
        %315 = vmatprep.subr.mxu0 0.0
        %316 = vmatpush1.msra.mxu0 0.0
        %317 = vmatprep.subr.mxu0 0.0
        %318 = vmatpush1.msra.mxu0 0.0
        %319 = vmatprep.subr.mxu0 0.0
        %320 = vmatpush1.msra.mxu0 0.0
        %321 = vmatprep.subr.mxu0 0.0
        %322 = vmatpush1.msra.mxu0 0.0
        %323 = vmatprep.subr.mxu0 0.0
        %324 = vmatpush1.msra.mxu0 0.0
        %325 = vmatprep.subr.mxu0 0.0
        %326 = vmatpush1.msra.mxu0 0.0
        %327 = vmatprep.subr.mxu0 0.0
        %328 = vmatpush1.msra.mxu0 0.0
        %329 = vmatprep.subr.mxu0 0.0
        %330 = vmatpush1.msra.mxu0 0.0
        %331 = vmatprep.subr.mxu0 0.0
        %332 = vmatpush1.msra.mxu0 0.0
        %333 = vmatprep.subr.mxu0 0.0
        %334 = vmatpush1.msra.mxu0 0.0
        %335 = vmatprep.subr.mxu0 0.0
        %336 = vmatpush1.msra.mxu0 0.0
        %337 = vmatprep.mubr.f32.mxu0 0.0
        %338 = vmatmul.mubr.f32.gmra.mrb[0].mxu0 %v271
        %v339 = vpop.f32.mrb[0].mxu0
        %v340 = vadd.f32 0.0, %v339
        %v341 = vpop.f32.mrb[0].mxu0
        %v342 = vadd.f32 0.0, %v341
        %343 = vdwg.mxu0
        %v344 = vld [vmem:[%s2 + $0x10] sm:$0xff]
        %v345 = vld [vmem:[%s2 + $0x18] sm:$0xff]
        %v346 = vld [vmem:[%s2 + $0x20] sm:$0xff]
        %v347 = vld [vmem:[%s2 + $0x28] sm:$0xff]
        %v348 = vld [vmem:[%s2 + $0x40] sm:$0xff]
        %v349 = vld [vmem:[%s2 + $0x48] sm:$0xff]
        %v350 = vld [vmem:[%s2 + $0x50] sm:$0xff]
        %v351 = vld [vmem:[%s2 + $0x58] sm:$0xff]
        %v352 = vld [vmem:[%s2 + $0x70] sm:$0xff]
        %v353 = vld [vmem:[%s2 + $0x78] sm:$0xff]
        %v354 = vld [vmem:[%s2 + $0x80] sm:$0xff]
        %v355 = vld [vmem:[%s2 + $0x88] sm:$0xff]
        %v356 = vld [vmem:[%s2 + $0xa0] sm:$0xff]
        %v357 = vld [vmem:[%s2 + $0xa8] sm:$0xff]
        %v358 = vld [vmem:[%s2 + $0xb0] sm:$0xff]
        %v359 = vld [vmem:[%s2 + $0xb8] sm:$0xff]
        %v361 = vsel %vm269, %v260, 0
        %363 = vmatprep.subr.mxu0 %v345
        %364 = vmatpush1.msra.mxu0 %v344
        %365 = vmatprep.subr.mxu0 %v349
        %366 = vmatpush1.msra.mxu0 %v348
        %367 = vmatprep.subr.mxu0 %v353
        %368 = vmatpush1.msra.mxu0 %v352
        %369 = vmatprep.subr.mxu0 %v357
        %370 = vmatpush1.msra.mxu0 %v356
        %371 = vmatprep.subr.mxu0 0.0
        %372 = vmatpush1.msra.mxu0 0.0
        %373 = vmatprep.subr.mxu0 0.0
        %374 = vmatpush1.msra.mxu0 0.0
        %375 = vmatprep.subr.mxu0 0.0
        %376 = vmatpush1.msra.mxu0 0.0
        %377 = vmatprep.subr.mxu0 0.0
        %378 = vmatpush1.msra.mxu0 0.0
        %379 = vmatprep.subr.mxu0 0.0
        %380 = vmatpush1.msra.mxu0 0.0
        %381 = vmatprep.subr.mxu0 0.0
        %382 = vmatpush1.msra.mxu0 0.0
        %383 = vmatprep.subr.mxu0 0.0
        %384 = vmatpush1.msra.mxu0 0.0
        %385 = vmatprep.subr.mxu0 0.0
        %386 = vmatpush1.msra.mxu0 0.0
        %387 = vmatprep.subr.mxu0 0.0
        %388 = vmatpush1.msra.mxu0 0.0
        %389 = vmatprep.subr.mxu0 0.0
        %390 = vmatpush1.msra.mxu0 0.0
        %391 = vmatprep.subr.mxu0 0.0
        %392 = vmatpush1.msra.mxu0 0.0
        %393 = vmatprep.subr.mxu0 0.0
        %394 = vmatpush1.msra.mxu0 0.0
        %395 = vmatprep.subr.mxu0 0.0
        %396 = vmatpush1.msra.mxu0 0.0
        %397 = vmatprep.subr.mxu0 0.0
        %398 = vmatpush1.msra.mxu0 0.0
        %399 = vmatprep.subr.mxu0 0.0
        %400 = vmatpush1.msra.mxu0 0.0
        %401 = vmatprep.subr.mxu0 0.0
        %402 = vmatpush1.msra.mxu0 0.0
        %403 = vmatprep.subr.mxu0 0.0
        %404 = vmatpush1.msra.mxu0 0.0
        %405 = vmatprep.subr.mxu0 0.0
        %406 = vmatpush1.msra.mxu0 0.0
        %407 = vmatprep.subr.mxu0 0.0
        %408 = vmatpush1.msra.mxu0 0.0
        %409 = vmatprep.subr.mxu0 0.0
        %410 = vmatpush1.msra.mxu0 0.0
        %411 = vmatprep.subr.mxu0 0.0
        %412 = vmatpush1.msra.mxu0 0.0
        %413 = vmatprep.subr.mxu0 0.0
        %414 = vmatpush1.msra.mxu0 0.0
        %415 = vmatprep.subr.mxu0 0.0
        %416 = vmatpush1.msra.mxu0 0.0
        %417 = vmatprep.subr.mxu0 0.0
        %418 = vmatpush1.msra.mxu0 0.0
        %419 = vmatprep.subr.mxu0 0.0
        %420 = vmatpush1.msra.mxu0 0.0
        %421 = vmatprep.subr.mxu0 0.0
        %422 = vmatpush1.msra.mxu0 0.0
        %423 = vmatprep.subr.mxu0 0.0
        %424 = vmatpush1.msra.mxu0 0.0
        %425 = vmatprep.subr.mxu0 0.0
        %426 = vmatpush1.msra.mxu0 0.0
        %427 = vmatprep.mubr.f32.mxu0 0.0
        %428 = vmatmul.mubr.f32.gmra.mrb[0].mxu0 %v361
        %v429 = vpop.f32.mrb[0].mxu0
        %v430 = vadd.f32 0.0, %v429
        %v431 = vpop.f32.mrb[0].mxu0
        %v432 = vadd.f32 0.0, %v431
        %433 = vdwg.mxu0
        %434 = vmatprep.subr.mxu0 %v347
        %435 = vmatpush1.msra.mxu0 %v346
        %436 = vmatprep.subr.mxu0 %v351
        %437 = vmatpush1.msra.mxu0 %v350
        %438 = vmatprep.subr.mxu0 %v355
        %439 = vmatpush1.msra.mxu0 %v354
        %440 = vmatprep.subr.mxu0 %v359
        %441 = vmatpush1.msra.mxu0 %v358
        %442 = vmatprep.subr.mxu0 0.0
        %443 = vmatpush1.msra.mxu0 0.0
        %444 = vmatprep.subr.mxu0 0.0
        %445 = vmatpush1.msra.mxu0 0.0
        %446 = vmatprep.subr.mxu0 0.0
        %447 = vmatpush1.msra.mxu0 0.0
        %448 = vmatprep.subr.mxu0 0.0
        %449 = vmatpush1.msra.mxu0 0.0
        %450 = vmatprep.subr.mxu0 0.0
        %451 = vmatpush1.msra.mxu0 0.0
        %452 = vmatprep.subr.mxu0 0.0
        %453 = vmatpush1.msra.mxu0 0.0
        %454 = vmatprep.subr.mxu0 0.0
        %455 = vmatpush1.msra.mxu0 0.0
        %456 = vmatprep.subr.mxu0 0.0
        %457 = vmatpush1.msra.mxu0 0.0
        %458 = vmatprep.subr.mxu0 0.0
        %459 = vmatpush1.msra.mxu0 0.0
        %460 = vmatprep.subr.mxu0 0.0
        %461 = vmatpush1.msra.mxu0 0.0
        %462 = vmatprep.subr.mxu0 0.0
        %463 = vmatpush1.msra.mxu0 0.0
        %464 = vmatprep.subr.mxu0 0.0
        %465 = vmatpush1.msra.mxu0 0.0
        %466 = vmatprep.subr.mxu0 0.0
        %467 = vmatpush1.msra.mxu0 0.0
        %468 = vmatprep.subr.mxu0 0.0
        %469 = vmatpush1.msra.mxu0 0.0
        %470 = vmatprep.subr.mxu0 0.0
        %471 = vmatpush1.msra.mxu0 0.0
        %472 = vmatprep.subr.mxu0 0.0
        %473 = vmatpush1.msra.mxu0 0.0
        %474 = vmatprep.subr.mxu0 0.0
        %475 = vmatpush1.msra.mxu0 0.0
        %476 = vmatprep.subr.mxu0 0.0
        %477 = vmatpush1.msra.mxu0 0.0
        %478 = vmatprep.subr.mxu0 0.0
        %479 = vmatpush1.msra.mxu0 0.0
        %480 = vmatprep.subr.mxu0 0.0
        %481 = vmatpush1.msra.mxu0 0.0
        %482 = vmatprep.subr.mxu0 0.0
        %483 = vmatpush1.msra.mxu0 0.0
        %484 = vmatprep.subr.mxu0 0.0
        %485 = vmatpush1.msra.mxu0 0.0
        %486 = vmatprep.subr.mxu0 0.0
        %487 = vmatpush1.msra.mxu0 0.0
        %488 = vmatprep.subr.mxu0 0.0
        %489 = vmatpush1.msra.mxu0 0.0
        %490 = vmatprep.subr.mxu0 0.0
        %491 = vmatpush1.msra.mxu0 0.0
        %492 = vmatprep.subr.mxu0 0.0
        %493 = vmatpush1.msra.mxu0 0.0
        %494 = vmatprep.subr.mxu0 0.0
        %495 = vmatpush1.msra.mxu0 0.0
        %496 = vmatprep.subr.mxu0 0.0
        %497 = vmatpush1.msra.mxu0 0.0
        %498 = vmatprep.mubr.f32.mxu0 0.0
        %499 = vmatmul.mubr.f32.gmra.mrb[0].mxu0 %v361
        %v500 = vpop.f32.mrb[0].mxu0
        %v501 = vadd.f32 0.0, %v500
        %v502 = vpop.f32.mrb[0].mxu0
        %v503 = vadd.f32 0.0, %v502
        %504 = vdwg.mxu0
        %v506 = vsel %vm269, %v340, 0
        %v509 = vsel %vm269, %v430, 0
        %511 = vmatprep.subr.mxu0 0.0
        %512 = vmatpush1.xpose.msra.mxu0 %v509
        %513 = vmatprep.subr.mxu0 0.0
        %514 = vmatpush1.xpose.msra.mxu0 0.0
        %515 = vmatprep.subr.mxu0 0.0
        %516 = vmatpush1.xpose.msra.mxu0 0.0
        %517 = vmatprep.subr.mxu0 0.0
        %518 = vmatpush1.xpose.msra.mxu0 0.0
        %519 = vmatprep.subr.mxu0 0.0
        %520 = vmatpush1.xpose.msra.mxu0 0.0
        %521 = vmatprep.subr.mxu0 0.0
        %522 = vmatpush1.xpose.msra.mxu0 0.0
        %523 = vmatprep.subr.mxu0 0.0
        %524 = vmatpush1.xpose.msra.mxu0 0.0
        %525 = vmatprep.subr.mxu0 0.0
        %526 = vmatpush1.xpose.msra.mxu0 0.0
        %527 = vmatprep.subr.mxu0 0.0
        %528 = vmatpush1.xpose.msra.mxu0 0.0
        %529 = vmatprep.subr.mxu0 0.0
        %530 = vmatpush1.xpose.msra.mxu0 0.0
        %531 = vmatprep.subr.mxu0 0.0
        %532 = vmatpush1.xpose.msra.mxu0 0.0
        %533 = vmatprep.subr.mxu0 0.0
        %534 = vmatpush1.xpose.msra.mxu0 0.0
        %535 = vmatprep.subr.mxu0 0.0
        %536 = vmatpush1.xpose.msra.mxu0 0.0
        %537 = vmatprep.subr.mxu0 0.0
        %538 = vmatpush1.xpose.msra.mxu0 0.0
        %539 = vmatprep.subr.mxu0 0.0
        %540 = vmatpush1.xpose.msra.mxu0 0.0
        %541 = vmatprep.subr.mxu0 0.0
        %542 = vmatpush1.xpose.msra.mxu0 0.0
        %543 = vmatprep.subr.mxu0 0.0
        %544 = vmatpush1.xpose.msra.mxu0 0.0
        %545 = vmatprep.subr.mxu0 0.0
        %546 = vmatpush1.xpose.msra.mxu0 0.0
        %547 = vmatprep.subr.mxu0 0.0
        %548 = vmatpush1.xpose.msra.mxu0 0.0
        %549 = vmatprep.subr.mxu0 0.0
        %550 = vmatpush1.xpose.msra.mxu0 0.0
        %551 = vmatprep.subr.mxu0 0.0
        %552 = vmatpush1.xpose.msra.mxu0 0.0
        %553 = vmatprep.subr.mxu0 0.0
        %554 = vmatpush1.xpose.msra.mxu0 0.0
        %555 = vmatprep.subr.mxu0 0.0
        %556 = vmatpush1.xpose.msra.mxu0 0.0
        %557 = vmatprep.subr.mxu0 0.0
        %558 = vmatpush1.xpose.msra.mxu0 0.0
        %559 = vmatprep.subr.mxu0 0.0
        %560 = vmatpush1.xpose.msra.mxu0 0.0
        %561 = vmatprep.subr.mxu0 0.0
        %562 = vmatpush1.xpose.msra.mxu0 0.0
        %563 = vmatprep.subr.mxu0 0.0
        %564 = vmatpush1.xpose.msra.mxu0 0.0
        %565 = vmatprep.subr.mxu0 0.0
        %566 = vmatpush1.xpose.msra.mxu0 0.0
        %567 = vmatprep.subr.mxu0 0.0
        %568 = vmatpush1.xpose.msra.mxu0 0.0
        %569 = vmatprep.subr.mxu0 0.0
        %570 = vmatpush1.xpose.msra.mxu0 0.0
        %571 = vmatprep.subr.mxu0 0.0
        %572 = vmatpush1.xpose.msra.mxu0 0.0
        %573 = vmatprep.subr.mxu0 0.0
        %574 = vmatpush1.xpose.msra.mxu0 0.0
        %575 = vmatprep.mubr.f32.mxu0 0.0
        %576 = vmatmul.mubr.f32.gmra.mrb[0].mxu0 %v506
        %v577 = vpop.f32.mrb[0].mxu0
        %v578 = vadd.f32 0.0, %v577
        %v579 = vpop.f32.mrb[0].mxu0
        %580 = vdwg.mxu0
        %vm581 = vcmask 64512
        %v582 = vsel %vm581, %v578, -inf
        %583 = vmax.xlane.f32.xlu0 %v582
        %v584 = vpop.xlane.xlu0 %583
        %v585 = vsub.f32 %v578, %v584
        %v586 = vmul.f32 %v585, 1.442695
        %v587 = vpow.pop %v586
        %v588 = vsel %vm581, %v587, 0.0
        %589 = vadd.xlane.f32.xlu0 %v588
        %v590 = vpop.xlane.xlu0 %589
        %v592 = vsel %vm581, %v587, 0
        %594 = vmatprep.subr.mxu0 0.0
        %595 = vmatpush1.msra.mxu0 %v501
        %596 = vmatprep.subr.mxu0 0.0
        %597 = vmatpush1.msra.mxu0 0.0
        %598 = vmatprep.subr.mxu0 0.0
        %599 = vmatpush1.msra.mxu0 0.0
        %600 = vmatprep.subr.mxu0 0.0
        %601 = vmatpush1.msra.mxu0 0.0
        %602 = vmatprep.subr.mxu0 0.0
        %603 = vmatpush1.msra.mxu0 0.0
        %604 = vmatprep.subr.mxu0 0.0
        %605 = vmatpush1.msra.mxu0 0.0
        %606 = vmatprep.subr.mxu0 0.0
        %607 = vmatpush1.msra.mxu0 0.0
        %608 = vmatprep.subr.mxu0 0.0
        %609 = vmatpush1.msra.mxu0 0.0
        %610 = vmatprep.subr.mxu0 0.0
        %611 = vmatpush1.msra.mxu0 0.0
        %612 = vmatprep.subr.mxu0 0.0
        %613 = vmatpush1.msra.mxu0 0.0
        %614 = vmatprep.subr.mxu0 0.0
        %615 = vmatpush1.msra.mxu0 0.0
        %616 = vmatprep.subr.mxu0 0.0
        %617 = vmatpush1.msra.mxu0 0.0
        %618 = vmatprep.subr.mxu0 0.0
        %619 = vmatpush1.msra.mxu0 0.0
        %620 = vmatprep.subr.mxu0 0.0
        %621 = vmatpush1.msra.mxu0 0.0
        %622 = vmatprep.subr.mxu0 0.0
        %623 = vmatpush1.msra.mxu0 0.0
        %624 = vmatprep.subr.mxu0 0.0
        %625 = vmatpush1.msra.mxu0 0.0
        %626 = vmatprep.subr.mxu0 0.0
        %627 = vmatpush1.msra.mxu0 0.0
        %628 = vmatprep.subr.mxu0 0.0
        %629 = vmatpush1.msra.mxu0 0.0
        %630 = vmatprep.subr.mxu0 0.0
        %631 = vmatpush1.msra.mxu0 0.0
        %632 = vmatprep.subr.mxu0 0.0
        %633 = vmatpush1.msra.mxu0 0.0
        %634 = vmatprep.subr.mxu0 0.0
        %635 = vmatpush1.msra.mxu0 0.0
        %636 = vmatprep.subr.mxu0 0.0
        %637 = vmatpush1.msra.mxu0 0.0
        %638 = vmatprep.subr.mxu0 0.0
        %639 = vmatpush1.msra.mxu0 0.0
        %640 = vmatprep.subr.mxu0 0.0
        %641 = vmatpush1.msra.mxu0 0.0
        %642 = vmatprep.subr.mxu0 0.0
        %643 = vmatpush1.msra.mxu0 0.0
        %644 = vmatprep.subr.mxu0 0.0
        %645 = vmatpush1.msra.mxu0 0.0
        %646 = vmatprep.subr.mxu0 0.0
        %647 = vmatpush1.msra.mxu0 0.0
        %648 = vmatprep.subr.mxu0 0.0
        %649 = vmatpush1.msra.mxu0 0.0
        %650 = vmatprep.subr.mxu0 0.0
        %651 = vmatpush1.msra.mxu0 0.0
        %652 = vmatprep.subr.mxu0 0.0
        %653 = vmatpush1.msra.mxu0 0.0
        %654 = vmatprep.subr.mxu0 0.0
        %655 = vmatpush1.msra.mxu0 0.0
        %656 = vmatprep.subr.mxu0 0.0
        %657 = vmatpush1.msra.mxu0 0.0
        %658 = vmatprep.mubr.f32.mxu0 0.0
        %659 = vmatmul.mubr.f32.gmra.mrb[0].mxu0 %v592
        %v660 = vpop.f32.mrb[0].mxu0
        %v661 = vadd.f32 0.0, %v660
        %v662 = vpop.f32.mrb[0].mxu0
        %663 = vdwg.mxu0
        %v664 = vrcp.pop %v590
        %v665 = vmul.f32 %v661, %v664
        %666 = vst.msk [vmem:[#allocation2] sm:$0xff] %vm269, %v665
        %667 = vrot.lane.b32.xlu0 %v340, 96
        %v668 = vpop.permute.xlu0 %667
        %669 = vrot.lane.b32.xlu0 %v430, 96
        %v670 = vpop.permute.xlu0 %669
        %v671 = vsel %vm269, %v668, 0
        %v673 = vsel %vm269, %v670, 0
        %675 = vmatprep.subr.mxu0 0.0
        %676 = vmatpush1.xpose.msra.mxu0 %v673
        %677 = vmatprep.subr.mxu0 0.0
        %678 = vmatpush1.xpose.msra.mxu0 0.0
        %679 = vmatprep.subr.mxu0 0.0
        %680 = vmatpush1.xpose.msra.mxu0 0.0
        %681 = vmatprep.subr.mxu0 0.0
        %682 = vmatpush1.xpose.msra.mxu0 0.0
        %683 = vmatprep.subr.mxu0 0.0
        %684 = vmatpush1.xpose.msra.mxu0 0.0
        %685 = vmatprep.subr.mxu0 0.0
        %686 = vmatpush1.xpose.msra.mxu0 0.0
        %687 = vmatprep.subr.mxu0 0.0
        %688 = vmatpush1.xpose.msra.mxu0 0.0
        %689 = vmatprep.subr.mxu0 0.0
        %690 = vmatpush1.xpose.msra.mxu0 0.0
        %691 = vmatprep.subr.mxu0 0.0
        %692 = vmatpush1.xpose.msra.mxu0 0.0
        %693 = vmatprep.subr.mxu0 0.0
        %694 = vmatpush1.xpose.msra.mxu0 0.0
        %695 = vmatprep.subr.mxu0 0.0
        %696 = vmatpush1.xpose.msra.mxu0 0.0
        %697 = vmatprep.subr.mxu0 0.0
        %698 = vmatpush1.xpose.msra.mxu0 0.0
        %699 = vmatprep.subr.mxu0 0.0
        %700 = vmatpush1.xpose.msra.mxu0 0.0
        %701 = vmatprep.subr.mxu0 0.0
        %702 = vmatpush1.xpose.msra.mxu0 0.0
        %703 = vmatprep.subr.mxu0 0.0
        %704 = vmatpush1.xpose.msra.mxu0 0.0
        %705 = vmatprep.subr.mxu0 0.0
        %706 = vmatpush1.xpose.msra.mxu0 0.0
        %707 = vmatprep.subr.mxu0 0.0
        %708 = vmatpush1.xpose.msra.mxu0 0.0
        %709 = vmatprep.subr.mxu0 0.0
        %710 = vmatpush1.xpose.msra.mxu0 0.0
        %711 = vmatprep.subr.mxu0 0.0
        %712 = vmatpush1.xpose.msra.mxu0 0.0
        %713 = vmatprep.subr.mxu0 0.0
        %714 = vmatpush1.xpose.msra.mxu0 0.0
        %715 = vmatprep.subr.mxu0 0.0
        %716 = vmatpush1.xpose.msra.mxu0 0.0
        %717 = vmatprep.subr.mxu0 0.0
        %718 = vmatpush1.xpose.msra.mxu0 0.0
        %719 = vmatprep.subr.mxu0 0.0
        %720 = vmatpush1.xpose.msra.mxu0 0.0
        %721 = vmatprep.subr.mxu0 0.0
        %722 = vmatpush1.xpose.msra.mxu0 0.0
        %723 = vmatprep.subr.mxu0 0.0
        %724 = vmatpush1.xpose.msra.mxu0 0.0
        %725 = vmatprep.subr.mxu0 0.0
        %726 = vmatpush1.xpose.msra.mxu0 0.0
        %727 = vmatprep.subr.mxu0 0.0
        %728 = vmatpush1.xpose.msra.mxu0 0.0
        %729 = vmatprep.subr.mxu0 0.0
        %730 = vmatpush1.xpose.msra.mxu0 0.0
        %731 = vmatprep.subr.mxu0 0.0
        %732 = vmatpush1.xpose.msra.mxu0 0.0
        %733 = vmatprep.subr.mxu0 0.0
        %734 = vmatpush1.xpose.msra.mxu0 0.0
        %735 = vmatprep.subr.mxu0 0.0
        %736 = vmatpush1.xpose.msra.mxu0 0.0
        %737 = vmatprep.subr.mxu0 0.0
        %738 = vmatpush1.xpose.msra.mxu0 0.0
        %739 = vmatprep.mubr.f32.mxu0 0.0
        %740 = vmatmul.mubr.f32.gmra.mrb[0].mxu0 %v671
        %v741 = vpop.f32.mrb[0].mxu0
        %v742 = vadd.f32 0.0, %v741
        %v743 = vpop.f32.mrb[0].mxu0
        %744 = vdwg.mxu0
        %v745 = vsel %vm581, %v742, -inf
        %746 = vmax.xlane.f32.xlu0 %v745
        %v747 = vpop.xlane.xlu0 %746
        %v748 = vsub.f32 %v742, %v747
        %v749 = vmul.f32 %v748, 1.442695
        %v750 = vpow.pop %v749
        %v751 = vsel %vm581, %v750, 0.0
        %752 = vadd.xlane.f32.xlu0 %v751
        %v753 = vpop.xlane.xlu0 %752
        %755 = vrot.lane.b32.xlu0 %v501, 96
        %v756 = vpop.permute.xlu0 %755
        %v759 = vsel %vm581, %v750, 0
        %761 = vmatprep.subr.mxu0 0.0
        %762 = vmatpush1.msra.mxu0 %v756
        %763 = vmatprep.subr.mxu0 0.0
        %764 = vmatpush1.msra.mxu0 0.0
        %765 = vmatprep.subr.mxu0 0.0
        %766 = vmatpush1.msra.mxu0 0.0
        %767 = vmatprep.subr.mxu0 0.0
        %768 = vmatpush1.msra.mxu0 0.0
        %769 = vmatprep.subr.mxu0 0.0
        %770 = vmatpush1.msra.mxu0 0.0
        %771 = vmatprep.subr.mxu0 0.0
        %772 = vmatpush1.msra.mxu0 0.0
        %773 = vmatprep.subr.mxu0 0.0
        %774 = vmatpush1.msra.mxu0 0.0
        %775 = vmatprep.subr.mxu0 0.0
        %776 = vmatpush1.msra.mxu0 0.0
        %777 = vmatprep.subr.mxu0 0.0
        %778 = vmatpush1.msra.mxu0 0.0
        %779 = vmatprep.subr.mxu0 0.0
        %780 = vmatpush1.msra.mxu0 0.0
        %781 = vmatprep.subr.mxu0 0.0
        %782 = vmatpush1.msra.mxu0 0.0
        %783 = vmatprep.subr.mxu0 0.0
        %784 = vmatpush1.msra.mxu0 0.0
        %785 = vmatprep.subr.mxu0 0.0
        %786 = vmatpush1.msra.mxu0 0.0
        %787 = vmatprep.subr.mxu0 0.0
        %788 = vmatpush1.msra.mxu0 0.0
        %789 = vmatprep.subr.mxu0 0.0
        %790 = vmatpush1.msra.mxu0 0.0
        %791 = vmatprep.subr.mxu0 0.0
        %792 = vmatpush1.msra.mxu0 0.0
        %793 = vmatprep.subr.mxu0 0.0
        %794 = vmatpush1.msra.mxu0 0.0
        %795 = vmatprep.subr.mxu0 0.0
        %796 = vmatpush1.msra.mxu0 0.0
        %797 = vmatprep.subr.mxu0 0.0
        %798 = vmatpush1.msra.mxu0 0.0
        %799 = vmatprep.subr.mxu0 0.0
        %800 = vmatpush1.msra.mxu0 0.0
        %801 = vmatprep.subr.mxu0 0.0
        %802 = vmatpush1.msra.mxu0 0.0
        %803 = vmatprep.subr.mxu0 0.0
        %804 = vmatpush1.msra.mxu0 0.0
        %805 = vmatprep.subr.mxu0 0.0
        %806 = vmatpush1.msra.mxu0 0.0
        %807 = vmatprep.subr.mxu0 0.0
        %808 = vmatpush1.msra.mxu0 0.0
        %809 = vmatprep.subr.mxu0 0.0
        %810 = vmatpush1.msra.mxu0 0.0
        %811 = vmatprep.subr.mxu0 0.0
        %812 = vmatpush1.msra.mxu0 0.0
        %813 = vmatprep.subr.mxu0 0.0
        %814 = vmatpush1.msra.mxu0 0.0
        %815 = vmatprep.subr.mxu0 0.0
        %816 = vmatpush1.msra.mxu0 0.0
        %817 = vmatprep.subr.mxu0 0.0
        %818 = vmatpush1.msra.mxu0 0.0
        %819 = vmatprep.subr.mxu0 0.0
        %820 = vmatpush1.msra.mxu0 0.0
        %821 = vmatprep.subr.mxu0 0.0
        %822 = vmatpush1.msra.mxu0 0.0
        %823 = vmatprep.subr.mxu0 0.0
        %824 = vmatpush1.msra.mxu0 0.0
        %825 = vmatprep.mubr.f32.mxu0 0.0
        %826 = vmatmul.mubr.f32.gmra.mrb[0].mxu0 %v759
        %v827 = vpop.f32.mrb[0].mxu0
        %v828 = vadd.f32 0.0, %v827
        %v829 = vpop.f32.mrb[0].mxu0
        %830 = vdwg.mxu0
        %v831 = vrcp.pop %v753
        %v832 = vmul.f32 %v828, %v831
        %834 = vrot.lane.b32.xlu0 %v832, 32
        %v835 = vpop.permute.xlu0 %834
        %vm837 = vcmask 523520
        %838 = vst.msk [vmem:[#allocation2] sm:$0xff] %vm837, %v835
        %839 = vrot.lane.b32.xlu0 %v340, 64
        %v840 = vpop.permute.xlu0 %839
        %841 = vrot.lane.b32.xlu0 %v430, 64
        %v842 = vpop.permute.xlu0 %841
        %v843 = vsel %vm269, %v840, 0
        %v845 = vsel %vm269, %v842, 0
        %847 = vmatprep.subr.mxu0 0.0
        %848 = vmatpush1.xpose.msra.mxu0 %v845
        %849 = vmatprep.subr.mxu0 0.0
        %850 = vmatpush1.xpose.msra.mxu0 0.0
        %851 = vmatprep.subr.mxu0 0.0
        %852 = vmatpush1.xpose.msra.mxu0 0.0
        %853 = vmatprep.subr.mxu0 0.0
        %854 = vmatpush1.xpose.msra.mxu0 0.0
        %855 = vmatprep.subr.mxu0 0.0
        %856 = vmatpush1.xpose.msra.mxu0 0.0
        %857 = vmatprep.subr.mxu0 0.0
        %858 = vmatpush1.xpose.msra.mxu0 0.0
        %859 = vmatprep.subr.mxu0 0.0
        %860 = vmatpush1.xpose.msra.mxu0 0.0
        %861 = vmatprep.subr.mxu0 0.0
        %862 = vmatpush1.xpose.msra.mxu0 0.0
        %863 = vmatprep.subr.mxu0 0.0
        %864 = vmatpush1.xpose.msra.mxu0 0.0
        %865 = vmatprep.subr.mxu0 0.0
        %866 = vmatpush1.xpose.msra.mxu0 0.0
        %867 = vmatprep.subr.mxu0 0.0
        %868 = vmatpush1.xpose.msra.mxu0 0.0
        %869 = vmatprep.subr.mxu0 0.0
        %870 = vmatpush1.xpose.msra.mxu0 0.0
        %871 = vmatprep.subr.mxu0 0.0
        %872 = vmatpush1.xpose.msra.mxu0 0.0
        %873 = vmatprep.subr.mxu0 0.0
        %874 = vmatpush1.xpose.msra.mxu0 0.0
        %875 = vmatprep.subr.mxu0 0.0
        %876 = vmatpush1.xpose.msra.mxu0 0.0
        %877 = vmatprep.subr.mxu0 0.0
        %878 = vmatpush1.xpose.msra.mxu0 0.0
        %879 = vmatprep.subr.mxu0 0.0
        %880 = vmatpush1.xpose.msra.mxu0 0.0
        %881 = vmatprep.subr.mxu0 0.0
        %882 = vmatpush1.xpose.msra.mxu0 0.0
        %883 = vmatprep.subr.mxu0 0.0
        %884 = vmatpush1.xpose.msra.mxu0 0.0
        %885 = vmatprep.subr.mxu0 0.0
        %886 = vmatpush1.xpose.msra.mxu0 0.0
        %887 = vmatprep.subr.mxu0 0.0
        %888 = vmatpush1.xpose.msra.mxu0 0.0
        %889 = vmatprep.subr.mxu0 0.0
        %890 = vmatpush1.xpose.msra.mxu0 0.0
        %891 = vmatprep.subr.mxu0 0.0
        %892 = vmatpush1.xpose.msra.mxu0 0.0
        %893 = vmatprep.subr.mxu0 0.0
        %894 = vmatpush1.xpose.msra.mxu0 0.0
        %895 = vmatprep.subr.mxu0 0.0
        %896 = vmatpush1.xpose.msra.mxu0 0.0
        %897 = vmatprep.subr.mxu0 0.0
        %898 = vmatpush1.xpose.msra.mxu0 0.0
        %899 = vmatprep.subr.mxu0 0.0
        %900 = vmatpush1.xpose.msra.mxu0 0.0
        %901 = vmatprep.subr.mxu0 0.0
        %902 = vmatpush1.xpose.msra.mxu0 0.0
        %903 = vmatprep.subr.mxu0 0.0
        %904 = vmatpush1.xpose.msra.mxu0 0.0
        %905 = vmatprep.subr.mxu0 0.0
        %906 = vmatpush1.xpose.msra.mxu0 0.0
        %907 = vmatprep.subr.mxu0 0.0
        %908 = vmatpush1.xpose.msra.mxu0 0.0
        %909 = vmatprep.subr.mxu0 0.0
        %910 = vmatpush1.xpose.msra.mxu0 0.0
        %911 = vmatprep.mubr.f32.mxu0 0.0
        %912 = vmatmul.mubr.f32.gmra.mrb[0].mxu0 %v843
        %v913 = vpop.f32.mrb[0].mxu0
        %v914 = vadd.f32 0.0, %v913
        %v915 = vpop.f32.mrb[0].mxu0
        %916 = vdwg.mxu0
        %v917 = vsel %vm581, %v914, -inf
        %918 = vmax.xlane.f32.xlu0 %v917
        %v919 = vpop.xlane.xlu0 %918
        %v920 = vsub.f32 %v914, %v919
        %v921 = vmul.f32 %v920, 1.442695
        %v922 = vpow.pop %v921
        %v923 = vsel %vm581, %v922, 0.0
        %924 = vadd.xlane.f32.xlu0 %v923
        %v925 = vpop.xlane.xlu0 %924
        %926 = vrot.lane.b32.xlu0 %v501, 64
        %v927 = vpop.permute.xlu0 %926
        %v930 = vsel %vm581, %v922, 0
        %932 = vmatprep.subr.mxu0 0.0
        %933 = vmatpush1.msra.mxu0 %v927
        %934 = vmatprep.subr.mxu0 0.0
        %935 = vmatpush1.msra.mxu0 0.0
        %936 = vmatprep.subr.mxu0 0.0
        %937 = vmatpush1.msra.mxu0 0.0
        %938 = vmatprep.subr.mxu0 0.0
        %939 = vmatpush1.msra.mxu0 0.0
        %940 = vmatprep.subr.mxu0 0.0
        %941 = vmatpush1.msra.mxu0 0.0
        %942 = vmatprep.subr.mxu0 0.0
        %943 = vmatpush1.msra.mxu0 0.0
        %944 = vmatprep.subr.mxu0 0.0
        %945 = vmatpush1.msra.mxu0 0.0
        %946 = vmatprep.subr.mxu0 0.0
        %947 = vmatpush1.msra.mxu0 0.0
        %948 = vmatprep.subr.mxu0 0.0
        %949 = vmatpush1.msra.mxu0 0.0
        %950 = vmatprep.subr.mxu0 0.0
        %951 = vmatpush1.msra.mxu0 0.0
        %952 = vmatprep.subr.mxu0 0.0
        %953 = vmatpush1.msra.mxu0 0.0
        %954 = vmatprep.subr.mxu0 0.0
        %955 = vmatpush1.msra.mxu0 0.0
        %956 = vmatprep.subr.mxu0 0.0
        %957 = vmatpush1.msra.mxu0 0.0
        %958 = vmatprep.subr.mxu0 0.0
        %959 = vmatpush1.msra.mxu0 0.0
        %960 = vmatprep.subr.mxu0 0.0
        %961 = vmatpush1.msra.mxu0 0.0
        %962 = vmatprep.subr.mxu0 0.0
        %963 = vmatpush1.msra.mxu0 0.0
        %964 = vmatprep.subr.mxu0 0.0
        %965 = vmatpush1.msra.mxu0 0.0
        %966 = vmatprep.subr.mxu0 0.0
        %967 = vmatpush1.msra.mxu0 0.0
        %968 = vmatprep.subr.mxu0 0.0
        %969 = vmatpush1.msra.mxu0 0.0
        %970 = vmatprep.subr.mxu0 0.0
        %971 = vmatpush1.msra.mxu0 0.0
        %972 = vmatprep.subr.mxu0 0.0
        %973 = vmatpush1.msra.mxu0 0.0
        %974 = vmatprep.subr.mxu0 0.0
        %975 = vmatpush1.msra.mxu0 0.0
        %976 = vmatprep.subr.mxu0 0.0
        %977 = vmatpush1.msra.mxu0 0.0
        %978 = vmatprep.subr.mxu0 0.0
        %979 = vmatpush1.msra.mxu0 0.0
        %980 = vmatprep.subr.mxu0 0.0
        %981 = vmatpush1.msra.mxu0 0.0
        %982 = vmatprep.subr.mxu0 0.0
        %983 = vmatpush1.msra.mxu0 0.0
        %984 = vmatprep.subr.mxu0 0.0
        %985 = vmatpush1.msra.mxu0 0.0
        %986 = vmatprep.subr.mxu0 0.0
        %987 = vmatpush1.msra.mxu0 0.0
        %988 = vmatprep.subr.mxu0 0.0
        %989 = vmatpush1.msra.mxu0 0.0
        %990 = vmatprep.subr.mxu0 0.0
        %991 = vmatpush1.msra.mxu0 0.0
        %992 = vmatprep.subr.mxu0 0.0
        %993 = vmatpush1.msra.mxu0 0.0
        %994 = vmatprep.subr.mxu0 0.0
        %995 = vmatpush1.msra.mxu0 0.0
        %996 = vmatprep.mubr.f32.mxu0 0.0
        %997 = vmatmul.mubr.f32.gmra.mrb[0].mxu0 %v930
        %v998 = vpop.f32.mrb[0].mxu0
        %v999 = vadd.f32 0.0, %v998
        %v1000 = vpop.f32.mrb[0].mxu0
        %1001 = vdwg.mxu0
        %v1002 = vrcp.pop %v925
        %v1003 = vmul.f32 %v999, %v1002
        %1005 = vrot.lane.b32.xlu0 %v1003, 64
        %v1006 = vpop.permute.xlu0 %1005
        %vm1008 = vcmask 785920
        %1009 = vst.msk [vmem:[#allocation2] sm:$0xff] %vm1008, %v1006
        %1010 = vrot.lane.b32.xlu0 %v340, 32
        %v1011 = vpop.permute.xlu0 %1010
        %1012 = vrot.lane.b32.xlu0 %v430, 32
        %v1013 = vpop.permute.xlu0 %1012
        %v1014 = vsel %vm269, %v1011, 0
        %v1016 = vsel %vm269, %v1013, 0
        %1018 = vmatprep.subr.mxu0 0.0
        %1019 = vmatpush1.xpose.msra.mxu0 %v1016
        %1020 = vmatprep.subr.mxu0 0.0
        %1021 = vmatpush1.xpose.msra.mxu0 0.0
        %1022 = vmatprep.subr.mxu0 0.0
        %1023 = vmatpush1.xpose.msra.mxu0 0.0
        %1024 = vmatprep.subr.mxu0 0.0
        %1025 = vmatpush1.xpose.msra.mxu0 0.0
        %1026 = vmatprep.subr.mxu0 0.0
        %1027 = vmatpush1.xpose.msra.mxu0 0.0
        %1028 = vmatprep.subr.mxu0 0.0
        %1029 = vmatpush1.xpose.msra.mxu0 0.0
        %1030 = vmatprep.subr.mxu0 0.0
        %1031 = vmatpush1.xpose.msra.mxu0 0.0
        %1032 = vmatprep.subr.mxu0 0.0
        %1033 = vmatpush1.xpose.msra.mxu0 0.0
        %1034 = vmatprep.subr.mxu0 0.0
        %1035 = vmatpush1.xpose.msra.mxu0 0.0
        %1036 = vmatprep.subr.mxu0 0.0
        %1037 = vmatpush1.xpose.msra.mxu0 0.0
        %1038 = vmatprep.subr.mxu0 0.0
        %1039 = vmatpush1.xpose.msra.mxu0 0.0
        %1040 = vmatprep.subr.mxu0 0.0
        %1041 = vmatpush1.xpose.msra.mxu0 0.0
        %1042 = vmatprep.subr.mxu0 0.0
        %1043 = vmatpush1.xpose.msra.mxu0 0.0
        %1044 = vmatprep.subr.mxu0 0.0
        %1045 = vmatpush1.xpose.msra.mxu0 0.0
        %1046 = vmatprep.subr.mxu0 0.0
        %1047 = vmatpush1.xpose.msra.mxu0 0.0
        %1048 = vmatprep.subr.mxu0 0.0
        %1049 = vmatpush1.xpose.msra.mxu0 0.0
        %1050 = vmatprep.subr.mxu0 0.0
        %1051 = vmatpush1.xpose.msra.mxu0 0.0
        %1052 = vmatprep.subr.mxu0 0.0
        %1053 = vmatpush1.xpose.msra.mxu0 0.0
        %1054 = vmatprep.subr.mxu0 0.0
        %1055 = vmatpush1.xpose.msra.mxu0 0.0
        %1056 = vmatprep.subr.mxu0 0.0
        %1057 = vmatpush1.xpose.msra.mxu0 0.0
        %1058 = vmatprep.subr.mxu0 0.0
        %1059 = vmatpush1.xpose.msra.mxu0 0.0
        %1060 = vmatprep.subr.mxu0 0.0
        %1061 = vmatpush1.xpose.msra.mxu0 0.0
        %1062 = vmatprep.subr.mxu0 0.0
        %1063 = vmatpush1.xpose.msra.mxu0 0.0
        %1064 = vmatprep.subr.mxu0 0.0
        %1065 = vmatpush1.xpose.msra.mxu0 0.0
        %1066 = vmatprep.subr.mxu0 0.0
        %1067 = vmatpush1.xpose.msra.mxu0 0.0
        %1068 = vmatprep.subr.mxu0 0.0
        %1069 = vmatpush1.xpose.msra.mxu0 0.0
        %1070 = vmatprep.subr.mxu0 0.0
        %1071 = vmatpush1.xpose.msra.mxu0 0.0
        %1072 = vmatprep.subr.mxu0 0.0
        %1073 = vmatpush1.xpose.msra.mxu0 0.0
        %1074 = vmatprep.subr.mxu0 0.0
        %1075 = vmatpush1.xpose.msra.mxu0 0.0
        %1076 = vmatprep.subr.mxu0 0.0
        %1077 = vmatpush1.xpose.msra.mxu0 0.0
        %1078 = vmatprep.subr.mxu0 0.0
        %1079 = vmatpush1.xpose.msra.mxu0 0.0
        %1080 = vmatprep.subr.mxu0 0.0
        %1081 = vmatpush1.xpose.msra.mxu0 0.0
        %1082 = vmatprep.mubr.f32.mxu0 0.0
        %1083 = vmatmul.mubr.f32.gmra.mrb[0].mxu0 %v1014
        %v1084 = vpop.f32.mrb[0].mxu0
        %v1085 = vadd.f32 0.0, %v1084
        %v1086 = vpop.f32.mrb[0].mxu0
        %1087 = vdwg.mxu0
        %v1088 = vsel %vm581, %v1085, -inf
        %1089 = vmax.xlane.f32.xlu0 %v1088
        %v1090 = vpop.xlane.xlu0 %1089
        %v1091 = vsub.f32 %v1085, %v1090
        %v1092 = vmul.f32 %v1091, 1.442695
        %v1093 = vpow.pop %v1092
        %v1094 = vsel %vm581, %v1093, 0.0
        %1095 = vadd.xlane.f32.xlu0 %v1094
        %v1096 = vpop.xlane.xlu0 %1095
        %1097 = vrot.lane.b32.xlu0 %v501, 32
        %v1098 = vpop.permute.xlu0 %1097
        %v1101 = vsel %vm581, %v1093, 0
        %1103 = vmatprep.subr.mxu0 0.0
        %1104 = vmatpush1.msra.mxu0 %v1098
        %1105 = vmatprep.subr.mxu0 0.0
        %1106 = vmatpush1.msra.mxu0 0.0
        %1107 = vmatprep.subr.mxu0 0.0
        %1108 = vmatpush1.msra.mxu0 0.0
        %1109 = vmatprep.subr.mxu0 0.0
        %1110 = vmatpush1.msra.mxu0 0.0
        %1111 = vmatprep.subr.mxu0 0.0
        %1112 = vmatpush1.msra.mxu0 0.0
        %1113 = vmatprep.subr.mxu0 0.0
        %1114 = vmatpush1.msra.mxu0 0.0
        %1115 = vmatprep.subr.mxu0 0.0
        %1116 = vmatpush1.msra.mxu0 0.0
        %1117 = vmatprep.subr.mxu0 0.0
        %1118 = vmatpush1.msra.mxu0 0.0
        %1119 = vmatprep.subr.mxu0 0.0
        %1120 = vmatpush1.msra.mxu0 0.0
        %1121 = vmatprep.subr.mxu0 0.0
        %1122 = vmatpush1.msra.mxu0 0.0
        %1123 = vmatprep.subr.mxu0 0.0
        %1124 = vmatpush1.msra.mxu0 0.0
        %1125 = vmatprep.subr.mxu0 0.0
        %1126 = vmatpush1.msra.mxu0 0.0
        %1127 = vmatprep.subr.mxu0 0.0
        %1128 = vmatpush1.msra.mxu0 0.0
        %1129 = vmatprep.subr.mxu0 0.0
        %1130 = vmatpush1.msra.mxu0 0.0
        %1131 = vmatprep.subr.mxu0 0.0
        %1132 = vmatpush1.msra.mxu0 0.0
        %1133 = vmatprep.subr.mxu0 0.0
        %1134 = vmatpush1.msra.mxu0 0.0
        %1135 = vmatprep.subr.mxu0 0.0
        %1136 = vmatpush1.msra.mxu0 0.0
        %1137 = vmatprep.subr.mxu0 0.0
        %1138 = vmatpush1.msra.mxu0 0.0
        %1139 = vmatprep.subr.mxu0 0.0
        %1140 = vmatpush1.msra.mxu0 0.0
        %1141 = vmatprep.subr.mxu0 0.0
        %1142 = vmatpush1.msra.mxu0 0.0
        %1143 = vmatprep.subr.mxu0 0.0
        %1144 = vmatpush1.msra.mxu0 0.0
        %1145 = vmatprep.subr.mxu0 0.0
        %1146 = vmatpush1.msra.mxu0 0.0
        %1147 = vmatprep.subr.mxu0 0.0
        %1148 = vmatpush1.msra.mxu0 0.0
        %1149 = vmatprep.subr.mxu0 0.0
        %1150 = vmatpush1.msra.mxu0 0.0
        %1151 = vmatprep.subr.mxu0 0.0
        %1152 = vmatpush1.msra.mxu0 0.0
        %1153 = vmatprep.subr.mxu0 0.0
        %1154 = vmatpush1.msra.mxu0 0.0
        %1155 = vmatprep.subr.mxu0 0.0
        %1156 = vmatpush1.msra.mxu0 0.0
        %1157 = vmatprep.subr.mxu0 0.0
        %1158 = vmatpush1.msra.mxu0 0.0
        %1159 = vmatprep.subr.mxu0 0.0
        %1160 = vmatpush1.msra.mxu0 0.0
        %1161 = vmatprep.subr.mxu0 0.0
        %1162 = vmatpush1.msra.mxu0 0.0
        %1163 = vmatprep.subr.mxu0 0.0
        %1164 = vmatpush1.msra.mxu0 0.0
        %1165 = vmatprep.subr.mxu0 0.0
        %1166 = vmatpush1.msra.mxu0 0.0
        %1167 = vmatprep.mubr.f32.mxu0 0.0
        %1168 = vmatmul.mubr.f32.gmra.mrb[0].mxu0 %v1101
        %v1169 = vpop.f32.mrb[0].mxu0
        %v1170 = vadd.f32 0.0, %v1169
        %v1171 = vpop.f32.mrb[0].mxu0
        %1172 = vdwg.mxu0
        %v1173 = vrcp.pop %v1096
        %v1174 = vmul.f32 %v1170, %v1173
        %1176 = vrot.lane.b32.xlu0 %v1174, 96
        %v1177 = vpop.permute.xlu0 %1176
        %vm1179 = vcmask 1048320
        %1180 = vst.msk [vmem:[#allocation2] sm:$0xff] %vm1179, %v1177
        %v1182 = vsel %vm269, %v342, 0
        %v1185 = vsel %vm269, %v432, 0
        %1187 = vmatprep.subr.mxu0 0.0
        %1188 = vmatpush1.xpose.msra.mxu0 %v1185
        %1189 = vmatprep.subr.mxu0 0.0
        %1190 = vmatpush1.xpose.msra.mxu0 0.0
        %1191 = vmatprep.subr.mxu0 0.0
        %1192 = vmatpush1.xpose.msra.mxu0 0.0
        %1193 = vmatprep.subr.mxu0 0.0
        %1194 = vmatpush1.xpose.msra.mxu0 0.0
        %1195 = vmatprep.subr.mxu0 0.0
        %1196 = vmatpush1.xpose.msra.mxu0 0.0
        %1197 = vmatprep.subr.mxu0 0.0
        %1198 = vmatpush1.xpose.msra.mxu0 0.0
        %1199 = vmatprep.subr.mxu0 0.0
        %1200 = vmatpush1.xpose.msra.mxu0 0.0
        %1201 = vmatprep.subr.mxu0 0.0
        %1202 = vmatpush1.xpose.msra.mxu0 0.0
        %1203 = vmatprep.subr.mxu0 0.0
        %1204 = vmatpush1.xpose.msra.mxu0 0.0
        %1205 = vmatprep.subr.mxu0 0.0
        %1206 = vmatpush1.xpose.msra.mxu0 0.0
        %1207 = vmatprep.subr.mxu0 0.0
        %1208 = vmatpush1.xpose.msra.mxu0 0.0
        %1209 = vmatprep.subr.mxu0 0.0
        %1210 = vmatpush1.xpose.msra.mxu0 0.0
        %1211 = vmatprep.subr.mxu0 0.0
        %1212 = vmatpush1.xpose.msra.mxu0 0.0
        %1213 = vmatprep.subr.mxu0 0.0
        %1214 = vmatpush1.xpose.msra.mxu0 0.0
        %1215 = vmatprep.subr.mxu0 0.0
        %1216 = vmatpush1.xpose.msra.mxu0 0.0
        %1217 = vmatprep.subr.mxu0 0.0
        %1218 = vmatpush1.xpose.msra.mxu0 0.0
        %1219 = vmatprep.subr.mxu0 0.0
        %1220 = vmatpush1.xpose.msra.mxu0 0.0
        %1221 = vmatprep.subr.mxu0 0.0
        %1222 = vmatpush1.xpose.msra.mxu0 0.0
        %1223 = vmatprep.subr.mxu0 0.0
        %1224 = vmatpush1.xpose.msra.mxu0 0.0
        %1225 = vmatprep.subr.mxu0 0.0
        %1226 = vmatpush1.xpose.msra.mxu0 0.0
        %1227 = vmatprep.subr.mxu0 0.0
        %1228 = vmatpush1.xpose.msra.mxu0 0.0
        %1229 = vmatprep.subr.mxu0 0.0
        %1230 = vmatpush1.xpose.msra.mxu0 0.0
        %1231 = vmatprep.subr.mxu0 0.0
        %1232 = vmatpush1.xpose.msra.mxu0 0.0
        %1233 = vmatprep.subr.mxu0 0.0
        %1234 = vmatpush1.xpose.msra.mxu0 0.0
        %1235 = vmatprep.subr.mxu0 0.0
        %1236 = vmatpush1.xpose.msra.mxu0 0.0
        %1237 = vmatprep.subr.mxu0 0.0
        %1238 = vmatpush1.xpose.msra.mxu0 0.0
        %1239 = vmatprep.subr.mxu0 0.0
        %1240 = vmatpush1.xpose.msra.mxu0 0.0
        %1241 = vmatprep.subr.mxu0 0.0
        %1242 = vmatpush1.xpose.msra.mxu0 0.0
        %1243 = vmatprep.subr.mxu0 0.0
        %1244 = vmatpush1.xpose.msra.mxu0 0.0
        %1245 = vmatprep.subr.mxu0 0.0
        %1246 = vmatpush1.xpose.msra.mxu0 0.0
        %1247 = vmatprep.subr.mxu0 0.0
        %1248 = vmatpush1.xpose.msra.mxu0 0.0
        %1249 = vmatprep.subr.mxu0 0.0
        %1250 = vmatpush1.xpose.msra.mxu0 0.0
        %1251 = vmatprep.mubr.f32.mxu0 0.0
        %1252 = vmatmul.mubr.f32.gmra.mrb[0].mxu0 %v1182
        %v1253 = vpop.f32.mrb[0].mxu0
        %v1254 = vadd.f32 0.0, %v1253
        %v1255 = vpop.f32.mrb[0].mxu0
        %1256 = vdwg.mxu0
        %v1257 = vsel %vm581, %v1254, -inf
        %1258 = vmax.xlane.f32.xlu0 %v1257
        %v1259 = vpop.xlane.xlu0 %1258
        %v1260 = vsub.f32 %v1254, %v1259
        %v1261 = vmul.f32 %v1260, 1.442695
        %v1262 = vpow.pop %v1261
        %v1263 = vsel %vm581, %v1262, 0.0
        %1264 = vadd.xlane.f32.xlu0 %v1263
        %v1265 = vpop.xlane.xlu0 %1264
        %v1267 = vsel %vm581, %v1262, 0
        %1269 = vmatprep.subr.mxu0 0.0
        %1270 = vmatpush1.msra.mxu0 %v503
        %1271 = vmatprep.subr.mxu0 0.0
        %1272 = vmatpush1.msra.mxu0 0.0
        %1273 = vmatprep.subr.mxu0 0.0
        %1274 = vmatpush1.msra.mxu0 0.0
        %1275 = vmatprep.subr.mxu0 0.0
        %1276 = vmatpush1.msra.mxu0 0.0
        %1277 = vmatprep.subr.mxu0 0.0
        %1278 = vmatpush1.msra.mxu0 0.0
        %1279 = vmatprep.subr.mxu0 0.0
        %1280 = vmatpush1.msra.mxu0 0.0
        %1281 = vmatprep.subr.mxu0 0.0
        %1282 = vmatpush1.msra.mxu0 0.0
        %1283 = vmatprep.subr.mxu0 0.0
        %1284 = vmatpush1.msra.mxu0 0.0
        %1285 = vmatprep.subr.mxu0 0.0
        %1286 = vmatpush1.msra.mxu0 0.0
        %1287 = vmatprep.subr.mxu0 0.0
        %1288 = vmatpush1.msra.mxu0 0.0
        %1289 = vmatprep.subr.mxu0 0.0
        %1290 = vmatpush1.msra.mxu0 0.0
        %1291 = vmatprep.subr.mxu0 0.0
        %1292 = vmatpush1.msra.mxu0 0.0
        %1293 = vmatprep.subr.mxu0 0.0
        %1294 = vmatpush1.msra.mxu0 0.0
        %1295 = vmatprep.subr.mxu0 0.0
        %1296 = vmatpush1.msra.mxu0 0.0
        %1297 = vmatprep.subr.mxu0 0.0
        %1298 = vmatpush1.msra.mxu0 0.0
        %1299 = vmatprep.subr.mxu0 0.0
        %1300 = vmatpush1.msra.mxu0 0.0
        %1301 = vmatprep.subr.mxu0 0.0
        %1302 = vmatpush1.msra.mxu0 0.0
        %1303 = vmatprep.subr.mxu0 0.0
        %1304 = vmatpush1.msra.mxu0 0.0
        %1305 = vmatprep.subr.mxu0 0.0
        %1306 = vmatpush1.msra.mxu0 0.0
        %1307 = vmatprep.subr.mxu0 0.0
        %1308 = vmatpush1.msra.mxu0 0.0
        %1309 = vmatprep.subr.mxu0 0.0
        %1310 = vmatpush1.msra.mxu0 0.0
        %1311 = vmatprep.subr.mxu0 0.0
        %1312 = vmatpush1.msra.mxu0 0.0
        %1313 = vmatprep.subr.mxu0 0.0
        %1314 = vmatpush1.msra.mxu0 0.0
        %1315 = vmatprep.subr.mxu0 0.0
        %1316 = vmatpush1.msra.mxu0 0.0
        %1317 = vmatprep.subr.mxu0 0.0
        %1318 = vmatpush1.msra.mxu0 0.0
        %1319 = vmatprep.subr.mxu0 0.0
        %1320 = vmatpush1.msra.mxu0 0.0
        %1321 = vmatprep.subr.mxu0 0.0
        %1322 = vmatpush1.msra.mxu0 0.0
        %1323 = vmatprep.subr.mxu0 0.0
        %1324 = vmatpush1.msra.mxu0 0.0
        %1325 = vmatprep.subr.mxu0 0.0
        %1326 = vmatpush1.msra.mxu0 0.0
        %1327 = vmatprep.subr.mxu0 0.0
        %1328 = vmatpush1.msra.mxu0 0.0
        %1329 = vmatprep.subr.mxu0 0.0
        %1330 = vmatpush1.msra.mxu0 0.0
        %1331 = vmatprep.subr.mxu0 0.0
        %1332 = vmatpush1.msra.mxu0 0.0
        %1333 = vmatprep.mubr.f32.mxu0 0.0
        %1334 = vmatmul.mubr.f32.gmra.mrb[0].mxu0 %v1267
        %v1335 = vpop.f32.mrb[0].mxu0
        %v1336 = vadd.f32 0.0, %v1335
        %v1337 = vpop.f32.mrb[0].mxu0
        %1338 = vdwg.mxu0
        %v1339 = vrcp.pop %v1265
        %v1340 = vmul.f32 %v1336, %v1339
        %1341 = vst.msk [vmem:[#allocation2 + $0x8] sm:$0xff] %vm269, %v1340
        %1342 = vrot.lane.b32.xlu0 %v342, 96
        %v1343 = vpop.permute.xlu0 %1342
        %1344 = vrot.lane.b32.xlu0 %v432, 96
        %v1345 = vpop.permute.xlu0 %1344
        %v1346 = vsel %vm269, %v1343, 0
        %v1348 = vsel %vm269, %v1345, 0
        %1350 = vmatprep.subr.mxu0 0.0
        %1351 = vmatpush1.xpose.msra.mxu0 %v1348
        %1352 = vmatprep.subr.mxu0 0.0
        %1353 = vmatpush1.xpose.msra.mxu0 0.0
        %1354 = vmatprep.subr.mxu0 0.0
        %1355 = vmatpush1.xpose.msra.mxu0 0.0
        %1356 = vmatprep.subr.mxu0 0.0
        %1357 = vmatpush1.xpose.msra.mxu0 0.0
        %1358 = vmatprep.subr.mxu0 0.0
        %1359 = vmatpush1.xpose.msra.mxu0 0.0
        %1360 = vmatprep.subr.mxu0 0.0
        %1361 = vmatpush1.xpose.msra.mxu0 0.0
        %1362 = vmatprep.subr.mxu0 0.0
        %1363 = vmatpush1.xpose.msra.mxu0 0.0
        %1364 = vmatprep.subr.mxu0 0.0
        %1365 = vmatpush1.xpose.msra.mxu0 0.0
        %1366 = vmatprep.subr.mxu0 0.0
        %1367 = vmatpush1.xpose.msra.mxu0 0.0
        %1368 = vmatprep.subr.mxu0 0.0
        %1369 = vmatpush1.xpose.msra.mxu0 0.0
        %1370 = vmatprep.subr.mxu0 0.0
        %1371 = vmatpush1.xpose.msra.mxu0 0.0
        %1372 = vmatprep.subr.mxu0 0.0
        %1373 = vmatpush1.xpose.msra.mxu0 0.0
        %1374 = vmatprep.subr.mxu0 0.0
        %1375 = vmatpush1.xpose.msra.mxu0 0.0
        %1376 = vmatprep.subr.mxu0 0.0
        %1377 = vmatpush1.xpose.msra.mxu0 0.0
        %1378 = vmatprep.subr.mxu0 0.0
        %1379 = vmatpush1.xpose.msra.mxu0 0.0
        %1380 = vmatprep.subr.mxu0 0.0
        %1381 = vmatpush1.xpose.msra.mxu0 0.0
        %1382 = vmatprep.subr.mxu0 0.0
        %1383 = vmatpush1.xpose.msra.mxu0 0.0
        %1384 = vmatprep.subr.mxu0 0.0
        %1385 = vmatpush1.xpose.msra.mxu0 0.0
        %1386 = vmatprep.subr.mxu0 0.0
        %1387 = vmatpush1.xpose.msra.mxu0 0.0
        %1388 = vmatprep.subr.mxu0 0.0
        %1389 = vmatpush1.xpose.msra.mxu0 0.0
        %1390 = vmatprep.subr.mxu0 0.0
        %1391 = vmatpush1.xpose.msra.mxu0 0.0
        %1392 = vmatprep.subr.mxu0 0.0
        %1393 = vmatpush1.xpose.msra.mxu0 0.0
        %1394 = vmatprep.subr.mxu0 0.0
        %1395 = vmatpush1.xpose.msra.mxu0 0.0
        %1396 = vmatprep.subr.mxu0 0.0
        %1397 = vmatpush1.xpose.msra.mxu0 0.0
        %1398 = vmatprep.subr.mxu0 0.0
        %1399 = vmatpush1.xpose.msra.mxu0 0.0
        %1400 = vmatprep.subr.mxu0 0.0
        %1401 = vmatpush1.xpose.msra.mxu0 0.0
        %1402 = vmatprep.subr.mxu0 0.0
        %1403 = vmatpush1.xpose.msra.mxu0 0.0
        %1404 = vmatprep.subr.mxu0 0.0
        %1405 = vmatpush1.xpose.msra.mxu0 0.0
        %1406 = vmatprep.subr.mxu0 0.0
        %1407 = vmatpush1.xpose.msra.mxu0 0.0
        %1408 = vmatprep.subr.mxu0 0.0
        %1409 = vmatpush1.xpose.msra.mxu0 0.0
        %1410 = vmatprep.subr.mxu0 0.0
        %1411 = vmatpush1.xpose.msra.mxu0 0.0
        %1412 = vmatprep.subr.mxu0 0.0
        %1413 = vmatpush1.xpose.msra.mxu0 0.0
        %1414 = vmatprep.mubr.f32.mxu0 0.0
        %1415 = vmatmul.mubr.f32.gmra.mrb[0].mxu0 %v1346
        %v1416 = vpop.f32.mrb[0].mxu0
        %v1417 = vadd.f32 0.0, %v1416
        %v1418 = vpop.f32.mrb[0].mxu0
        %1419 = vdwg.mxu0
        %v1420 = vsel %vm581, %v1417, -inf
        %1421 = vmax.xlane.f32.xlu0 %v1420
        %v1422 = vpop.xlane.xlu0 %1421
        %v1423 = vsub.f32 %v1417, %v1422
        %v1424 = vmul.f32 %v1423, 1.442695
        %v1425 = vpow.pop %v1424
        %v1426 = vsel %vm581, %v1425, 0.0
        %1427 = vadd.xlane.f32.xlu0 %v1426
        %v1428 = vpop.xlane.xlu0 %1427
        %1430 = vrot.lane.b32.xlu0 %v503, 96
        %v1431 = vpop.permute.xlu0 %1430
        %v1434 = vsel %vm581, %v1425, 0
        %1436 = vmatprep.subr.mxu0 0.0
        %1437 = vmatpush1.msra.mxu0 %v1431
        %1438 = vmatprep.subr.mxu0 0.0
        %1439 = vmatpush1.msra.mxu0 0.0
        %1440 = vmatprep.subr.mxu0 0.0
        %1441 = vmatpush1.msra.mxu0 0.0
        %1442 = vmatprep.subr.mxu0 0.0
        %1443 = vmatpush1.msra.mxu0 0.0
        %1444 = vmatprep.subr.mxu0 0.0
        %1445 = vmatpush1.msra.mxu0 0.0
        %1446 = vmatprep.subr.mxu0 0.0
        %1447 = vmatpush1.msra.mxu0 0.0
        %1448 = vmatprep.subr.mxu0 0.0
        %1449 = vmatpush1.msra.mxu0 0.0
        %1450 = vmatprep.subr.mxu0 0.0
        %1451 = vmatpush1.msra.mxu0 0.0
        %1452 = vmatprep.subr.mxu0 0.0
        %1453 = vmatpush1.msra.mxu0 0.0
        %1454 = vmatprep.subr.mxu0 0.0
        %1455 = vmatpush1.msra.mxu0 0.0
        %1456 = vmatprep.subr.mxu0 0.0
        %1457 = vmatpush1.msra.mxu0 0.0
        %1458 = vmatprep.subr.mxu0 0.0
        %1459 = vmatpush1.msra.mxu0 0.0
        %1460 = vmatprep.subr.mxu0 0.0
        %1461 = vmatpush1.msra.mxu0 0.0
        %1462 = vmatprep.subr.mxu0 0.0
        %1463 = vmatpush1.msra.mxu0 0.0
        %1464 = vmatprep.subr.mxu0 0.0
        %1465 = vmatpush1.msra.mxu0 0.0
        %1466 = vmatprep.subr.mxu0 0.0
        %1467 = vmatpush1.msra.mxu0 0.0
        %1468 = vmatprep.subr.mxu0 0.0
        %1469 = vmatpush1.msra.mxu0 0.0
        %1470 = vmatprep.subr.mxu0 0.0
        %1471 = vmatpush1.msra.mxu0 0.0
        %1472 = vmatprep.subr.mxu0 0.0
        %1473 = vmatpush1.msra.mxu0 0.0
        %1474 = vmatprep.subr.mxu0 0.0
        %1475 = vmatpush1.msra.mxu0 0.0
        %1476 = vmatprep.subr.mxu0 0.0
        %1477 = vmatpush1.msra.mxu0 0.0
        %1478 = vmatprep.subr.mxu0 0.0
        %1479 = vmatpush1.msra.mxu0 0.0
        %1480 = vmatprep.subr.mxu0 0.0
        %1481 = vmatpush1.msra.mxu0 0.0
        %1482 = vmatprep.subr.mxu0 0.0
        %1483 = vmatpush1.msra.mxu0 0.0
        %1484 = vmatprep.subr.mxu0 0.0
        %1485 = vmatpush1.msra.mxu0 0.0
        %1486 = vmatprep.subr.mxu0 0.0
        %1487 = vmatpush1.msra.mxu0 0.0
        %1488 = vmatprep.subr.mxu0 0.0
        %1489 = vmatpush1.msra.mxu0 0.0
        %1490 = vmatprep.subr.mxu0 0.0
        %1491 = vmatpush1.msra.mxu0 0.0
        %1492 = vmatprep.subr.mxu0 0.0
        %1493 = vmatpush1.msra.mxu0 0.0
        %1494 = vmatprep.subr.mxu0 0.0
        %1495 = vmatpush1.msra.mxu0 0.0
        %1496 = vmatprep.subr.mxu0 0.0
        %1497 = vmatpush1.msra.mxu0 0.0
        %1498 = vmatprep.subr.mxu0 0.0
        %1499 = vmatpush1.msra.mxu0 0.0
        %1500 = vmatprep.mubr.f32.mxu0 0.0
        %1501 = vmatmul.mubr.f32.gmra.mrb[0].mxu0 %v1434
        %v1502 = vpop.f32.mrb[0].mxu0
        %v1503 = vadd.f32 0.0, %v1502
        %v1504 = vpop.f32.mrb[0].mxu0
        %1505 = vdwg.mxu0
        %v1506 = vrcp.pop %v1428
        %v1507 = vmul.f32 %v1503, %v1506
        %1509 = vrot.lane.b32.xlu0 %v1507, 32
        %v1510 = vpop.permute.xlu0 %1509
        %1512 = vst.msk [vmem:[#allocation2 + $0x8] sm:$0xff] %vm837, %v1510
        %1513 = vrot.lane.b32.xlu0 %v342, 64
        %v1514 = vpop.permute.xlu0 %1513
        %1515 = vrot.lane.b32.xlu0 %v432, 64
        %v1516 = vpop.permute.xlu0 %1515
        %v1517 = vsel %vm269, %v1514, 0
        %v1519 = vsel %vm269, %v1516, 0
        %1521 = vmatprep.subr.mxu0 0.0
        %1522 = vmatpush1.xpose.msra.mxu0 %v1519
        %1523 = vmatprep.subr.mxu0 0.0
        %1524 = vmatpush1.xpose.msra.mxu0 0.0
        %1525 = vmatprep.subr.mxu0 0.0
        %1526 = vmatpush1.xpose.msra.mxu0 0.0
        %1527 = vmatprep.subr.mxu0 0.0
        %1528 = vmatpush1.xpose.msra.mxu0 0.0
        %1529 = vmatprep.subr.mxu0 0.0
        %1530 = vmatpush1.xpose.msra.mxu0 0.0
        %1531 = vmatprep.subr.mxu0 0.0
        %1532 = vmatpush1.xpose.msra.mxu0 0.0
        %1533 = vmatprep.subr.mxu0 0.0
        %1534 = vmatpush1.xpose.msra.mxu0 0.0
        %1535 = vmatprep.subr.mxu0 0.0
        %1536 = vmatpush1.xpose.msra.mxu0 0.0
        %1537 = vmatprep.subr.mxu0 0.0
        %1538 = vmatpush1.xpose.msra.mxu0 0.0
        %1539 = vmatprep.subr.mxu0 0.0
        %1540 = vmatpush1.xpose.msra.mxu0 0.0
        %1541 = vmatprep.subr.mxu0 0.0
        %1542 = vmatpush1.xpose.msra.mxu0 0.0
        %1543 = vmatprep.subr.mxu0 0.0
        %1544 = vmatpush1.xpose.msra.mxu0 0.0
        %1545 = vmatprep.subr.mxu0 0.0
        %1546 = vmatpush1.xpose.msra.mxu0 0.0
        %1547 = vmatprep.subr.mxu0 0.0
        %1548 = vmatpush1.xpose.msra.mxu0 0.0
        %1549 = vmatprep.subr.mxu0 0.0
        %1550 = vmatpush1.xpose.msra.mxu0 0.0
        %1551 = vmatprep.subr.mxu0 0.0
        %1552 = vmatpush1.xpose.msra.mxu0 0.0
        %1553 = vmatprep.subr.mxu0 0.0
        %1554 = vmatpush1.xpose.msra.mxu0 0.0
        %1555 = vmatprep.subr.mxu0 0.0
        %1556 = vmatpush1.xpose.msra.mxu0 0.0
        %1557 = vmatprep.subr.mxu0 0.0
        %1558 = vmatpush1.xpose.msra.mxu0 0.0
        %1559 = vmatprep.subr.mxu0 0.0
        %1560 = vmatpush1.xpose.msra.mxu0 0.0
        %1561 = vmatprep.subr.mxu0 0.0
        %1562 = vmatpush1.xpose.msra.mxu0 0.0
        %1563 = vmatprep.subr.mxu0 0.0
        %1564 = vmatpush1.xpose.msra.mxu0 0.0
        %1565 = vmatprep.subr.mxu0 0.0
        %1566 = vmatpush1.xpose.msra.mxu0 0.0
        %1567 = vmatprep.subr.mxu0 0.0
        %1568 = vmatpush1.xpose.msra.mxu0 0.0
        %1569 = vmatprep.subr.mxu0 0.0
        %1570 = vmatpush1.xpose.msra.mxu0 0.0
        %1571 = vmatprep.subr.mxu0 0.0
        %1572 = vmatpush1.xpose.msra.mxu0 0.0
        %1573 = vmatprep.subr.mxu0 0.0
        %1574 = vmatpush1.xpose.msra.mxu0 0.0
        %1575 = vmatprep.subr.mxu0 0.0
        %1576 = vmatpush1.xpose.msra.mxu0 0.0
        %1577 = vmatprep.subr.mxu0 0.0
        %1578 = vmatpush1.xpose.msra.mxu0 0.0
        %1579 = vmatprep.subr.mxu0 0.0
        %1580 = vmatpush1.xpose.msra.mxu0 0.0
        %1581 = vmatprep.subr.mxu0 0.0
        %1582 = vmatpush1.xpose.msra.mxu0 0.0
        %1583 = vmatprep.subr.mxu0 0.0
        %1584 = vmatpush1.xpose.msra.mxu0 0.0
        %1585 = vmatprep.mubr.f32.mxu0 0.0
        %1586 = vmatmul.mubr.f32.gmra.mrb[0].mxu0 %v1517
        %v1587 = vpop.f32.mrb[0].mxu0
        %v1588 = vadd.f32 0.0, %v1587
        %v1589 = vpop.f32.mrb[0].mxu0
        %1590 = vdwg.mxu0
        %v1591 = vsel %vm581, %v1588, -inf
        %1592 = vmax.xlane.f32.xlu0 %v1591
        %v1593 = vpop.xlane.xlu0 %1592
        %v1594 = vsub.f32 %v1588, %v1593
        %v1595 = vmul.f32 %v1594, 1.442695
        %v1596 = vpow.pop %v1595
        %v1597 = vsel %vm581, %v1596, 0.0
        %1598 = vadd.xlane.f32.xlu0 %v1597
        %v1599 = vpop.xlane.xlu0 %1598
        %1600 = vrot.lane.b32.xlu0 %v503, 64
        %v1601 = vpop.permute.xlu0 %1600
        %v1604 = vsel %vm581, %v1596, 0
        %1606 = vmatprep.subr.mxu0 0.0
        %1607 = vmatpush1.msra.mxu0 %v1601
        %1608 = vmatprep.subr.mxu0 0.0
        %1609 = vmatpush1.msra.mxu0 0.0
        %1610 = vmatprep.subr.mxu0 0.0
        %1611 = vmatpush1.msra.mxu0 0.0
        %1612 = vmatprep.subr.mxu0 0.0
        %1613 = vmatpush1.msra.mxu0 0.0
        %1614 = vmatprep.subr.mxu0 0.0
        %1615 = vmatpush1.msra.mxu0 0.0
        %1616 = vmatprep.subr.mxu0 0.0
        %1617 = vmatpush1.msra.mxu0 0.0
        %1618 = vmatprep.subr.mxu0 0.0
        %1619 = vmatpush1.msra.mxu0 0.0
        %1620 = vmatprep.subr.mxu0 0.0
        %1621 = vmatpush1.msra.mxu0 0.0
        %1622 = vmatprep.subr.mxu0 0.0
        %1623 = vmatpush1.msra.mxu0 0.0
        %1624 = vmatprep.subr.mxu0 0.0
        %1625 = vmatpush1.msra.mxu0 0.0
        %1626 = vmatprep.subr.mxu0 0.0
        %1627 = vmatpush1.msra.mxu0 0.0
        %1628 = vmatprep.subr.mxu0 0.0
        %1629 = vmatpush1.msra.mxu0 0.0
        %1630 = vmatprep.subr.mxu0 0.0
        %1631 = vmatpush1.msra.mxu0 0.0
        %1632 = vmatprep.subr.mxu0 0.0
        %1633 = vmatpush1.msra.mxu0 0.0
        %1634 = vmatprep.subr.mxu0 0.0
        %1635 = vmatpush1.msra.mxu0 0.0
        %1636 = vmatprep.subr.mxu0 0.0
        %1637 = vmatpush1.msra.mxu0 0.0
        %1638 = vmatprep.subr.mxu0 0.0
        %1639 = vmatpush1.msra.mxu0 0.0
        %1640 = vmatprep.subr.mxu0 0.0
        %1641 = vmatpush1.msra.mxu0 0.0
        %1642 = vmatprep.subr.mxu0 0.0
        %1643 = vmatpush1.msra.mxu0 0.0
        %1644 = vmatprep.subr.mxu0 0.0
        %1645 = vmatpush1.msra.mxu0 0.0
        %1646 = vmatprep.subr.mxu0 0.0
        %1647 = vmatpush1.msra.mxu0 0.0
        %1648 = vmatprep.subr.mxu0 0.0
        %1649 = vmatpush1.msra.mxu0 0.0
        %1650 = vmatprep.subr.mxu0 0.0
        %1651 = vmatpush1.msra.mxu0 0.0
        %1652 = vmatprep.subr.mxu0 0.0
        %1653 = vmatpush1.msra.mxu0 0.0
        %1654 = vmatprep.subr.mxu0 0.0
        %1655 = vmatpush1.msra.mxu0 0.0
        %1656 = vmatprep.subr.mxu0 0.0
        %1657 = vmatpush1.msra.mxu0 0.0
        %1658 = vmatprep.subr.mxu0 0.0
        %1659 = vmatpush1.msra.mxu0 0.0
        %1660 = vmatprep.subr.mxu0 0.0
        %1661 = vmatpush1.msra.mxu0 0.0
        %1662 = vmatprep.subr.mxu0 0.0
        %1663 = vmatpush1.msra.mxu0 0.0
        %1664 = vmatprep.subr.mxu0 0.0
        %1665 = vmatpush1.msra.mxu0 0.0
        %1666 = vmatprep.subr.mxu0 0.0
        %1667 = vmatpush1.msra.mxu0 0.0
        %1668 = vmatprep.subr.mxu0 0.0
        %1669 = vmatpush1.msra.mxu0 0.0
        %1670 = vmatprep.mubr.f32.mxu0 0.0
        %1671 = vmatmul.mubr.f32.gmra.mrb[0].mxu0 %v1604
        %v1672 = vpop.f32.mrb[0].mxu0
        %v1673 = vadd.f32 0.0, %v1672
        %v1674 = vpop.f32.mrb[0].mxu0
        %1675 = vdwg.mxu0
        %v1676 = vrcp.pop %v1599
        %v1677 = vmul.f32 %v1673, %v1676
        %1679 = vrot.lane.b32.xlu0 %v1677, 64
        %v1680 = vpop.permute.xlu0 %1679
        %1682 = vst.msk [vmem:[#allocation2 + $0x8] sm:$0xff] %vm1008, %v1680
        %1683 = vrot.lane.b32.xlu0 %v342, 32
        %v1684 = vpop.permute.xlu0 %1683
        %1685 = vrot.lane.b32.xlu0 %v432, 32
        %v1686 = vpop.permute.xlu0 %1685
        %v1687 = vsel %vm269, %v1684, 0
        %v1689 = vsel %vm269, %v1686, 0
        %1691 = vmatprep.subr.mxu0 0.0
        %1692 = vmatpush1.xpose.msra.mxu0 %v1689
        %1693 = vmatprep.subr.mxu0 0.0
        %1694 = vmatpush1.xpose.msra.mxu0 0.0
        %1695 = vmatprep.subr.mxu0 0.0
        %1696 = vmatpush1.xpose.msra.mxu0 0.0
        %1697 = vmatprep.subr.mxu0 0.0
        %1698 = vmatpush1.xpose.msra.mxu0 0.0
        %1699 = vmatprep.subr.mxu0 0.0
        %1700 = vmatpush1.xpose.msra.mxu0 0.0
        %1701 = vmatprep.subr.mxu0 0.0
        %1702 = vmatpush1.xpose.msra.mxu0 0.0
        %1703 = vmatprep.subr.mxu0 0.0
        %1704 = vmatpush1.xpose.msra.mxu0 0.0
        %1705 = vmatprep.subr.mxu0 0.0
        %1706 = vmatpush1.xpose.msra.mxu0 0.0
        %1707 = vmatprep.subr.mxu0 0.0
        %1708 = vmatpush1.xpose.msra.mxu0 0.0
        %1709 = vmatprep.subr.mxu0 0.0
        %1710 = vmatpush1.xpose.msra.mxu0 0.0
        %1711 = vmatprep.subr.mxu0 0.0
        %1712 = vmatpush1.xpose.msra.mxu0 0.0
        %1713 = vmatprep.subr.mxu0 0.0
        %1714 = vmatpush1.xpose.msra.mxu0 0.0
        %1715 = vmatprep.subr.mxu0 0.0
        %1716 = vmatpush1.xpose.msra.mxu0 0.0
        %1717 = vmatprep.subr.mxu0 0.0
        %1718 = vmatpush1.xpose.msra.mxu0 0.0
        %1719 = vmatprep.subr.mxu0 0.0
        %1720 = vmatpush1.xpose.msra.mxu0 0.0
        %1721 = vmatprep.subr.mxu0 0.0
        %1722 = vmatpush1.xpose.msra.mxu0 0.0
        %1723 = vmatprep.subr.mxu0 0.0
        %1724 = vmatpush1.xpose.msra.mxu0 0.0
        %1725 = vmatprep.subr.mxu0 0.0
        %1726 = vmatpush1.xpose.msra.mxu0 0.0
        %1727 = vmatprep.subr.mxu0 0.0
        %1728 = vmatpush1.xpose.msra.mxu0 0.0
        %1729 = vmatprep.subr.mxu0 0.0
        %1730 = vmatpush1.xpose.msra.mxu0 0.0
        %1731 = vmatprep.subr.mxu0 0.0
        %1732 = vmatpush1.xpose.msra.mxu0 0.0
        %1733 = vmatprep.subr.mxu0 0.0
        %1734 = vmatpush1.xpose.msra.mxu0 0.0
        %1735 = vmatprep.subr.mxu0 0.0
        %1736 = vmatpush1.xpose.msra.mxu0 0.0
        %1737 = vmatprep.subr.mxu0 0.0
        %1738 = vmatpush1.xpose.msra.mxu0 0.0
        %1739 = vmatprep.subr.mxu0 0.0
        %1740 = vmatpush1.xpose.msra.mxu0 0.0
        %1741 = vmatprep.subr.mxu0 0.0
        %1742 = vmatpush1.xpose.msra.mxu0 0.0
        %1743 = vmatprep.subr.mxu0 0.0
        %1744 = vmatpush1.xpose.msra.mxu0 0.0
        %1745 = vmatprep.subr.mxu0 0.0
        %1746 = vmatpush1.xpose.msra.mxu0 0.0
        %1747 = vmatprep.subr.mxu0 0.0
        %1748 = vmatpush1.xpose.msra.mxu0 0.0
        %1749 = vmatprep.subr.mxu0 0.0
        %1750 = vmatpush1.xpose.msra.mxu0 0.0
        %1751 = vmatprep.subr.mxu0 0.0
        %1752 = vmatpush1.xpose.msra.mxu0 0.0
        %1753 = vmatprep.subr.mxu0 0.0
        %1754 = vmatpush1.xpose.msra.mxu0 0.0
        %1755 = vmatprep.mubr.f32.mxu0 0.0
        %1756 = vmatmul.mubr.f32.gmra.mrb[0].mxu0 %v1687
        %v1757 = vpop.f32.mrb[0].mxu0
        %v1758 = vadd.f32 0.0, %v1757
        %v1759 = vpop.f32.mrb[0].mxu0
        %1760 = vdwg.mxu0
        %v1761 = vsel %vm581, %v1758, -inf
        %1762 = vmax.xlane.f32.xlu0 %v1761
        %v1763 = vpop.xlane.xlu0 %1762
        %v1764 = vsub.f32 %v1758, %v1763
        %v1765 = vmul.f32 %v1764, 1.442695
        %v1766 = vpow.pop %v1765
        %v1767 = vsel %vm581, %v1766, 0.0
        %1768 = vadd.xlane.f32.xlu0 %v1767
        %v1769 = vpop.xlane.xlu0 %1768
        %1770 = vrot.lane.b32.xlu0 %v503, 32
        %v1771 = vpop.permute.xlu0 %1770
        %v1774 = vsel %vm581, %v1766, 0
        %1776 = vmatprep.subr.mxu0 0.0
        %1777 = vmatpush1.msra.mxu0 %v1771
        %1778 = vmatprep.subr.mxu0 0.0
        %1779 = vmatpush1.msra.mxu0 0.0
        %1780 = vmatprep.subr.mxu0 0.0
        %1781 = vmatpush1.msra.mxu0 0.0
        %1782 = vmatprep.subr.mxu0 0.0
        %1783 = vmatpush1.msra.mxu0 0.0
        %1784 = vmatprep.subr.mxu0 0.0
        %1785 = vmatpush1.msra.mxu0 0.0
        %1786 = vmatprep.subr.mxu0 0.0
        %1787 = vmatpush1.msra.mxu0 0.0
        %1788 = vmatprep.subr.mxu0 0.0
        %1789 = vmatpush1.msra.mxu0 0.0
        %1790 = vmatprep.subr.mxu0 0.0
        %1791 = vmatpush1.msra.mxu0 0.0
        %1792 = vmatprep.subr.mxu0 0.0
        %1793 = vmatpush1.msra.mxu0 0.0
        %1794 = vmatprep.subr.mxu0 0.0
        %1795 = vmatpush1.msra.mxu0 0.0
        %1796 = vmatprep.subr.mxu0 0.0
        %1797 = vmatpush1.msra.mxu0 0.0
        %1798 = vmatprep.subr.mxu0 0.0
        %1799 = vmatpush1.msra.mxu0 0.0
        %1800 = vmatprep.subr.mxu0 0.0
        %1801 = vmatpush1.msra.mxu0 0.0
        %1802 = vmatprep.subr.mxu0 0.0
        %1803 = vmatpush1.msra.mxu0 0.0
        %1804 = vmatprep.subr.mxu0 0.0
        %1805 = vmatpush1.msra.mxu0 0.0
        %1806 = vmatprep.subr.mxu0 0.0
        %1807 = vmatpush1.msra.mxu0 0.0
        %1808 = vmatprep.subr.mxu0 0.0
        %1809 = vmatpush1.msra.mxu0 0.0
        %1810 = vmatprep.subr.mxu0 0.0
        %1811 = vmatpush1.msra.mxu0 0.0
        %1812 = vmatprep.subr.mxu0 0.0
        %1813 = vmatpush1.msra.mxu0 0.0
        %1814 = vmatprep.subr.mxu0 0.0
        %1815 = vmatpush1.msra.mxu0 0.0
        %1816 = vmatprep.subr.mxu0 0.0
        %1817 = vmatpush1.msra.mxu0 0.0
        %1818 = vmatprep.subr.mxu0 0.0
        %1819 = vmatpush1.msra.mxu0 0.0
        %1820 = vmatprep.subr.mxu0 0.0
        %1821 = vmatpush1.msra.mxu0 0.0
        %1822 = vmatprep.subr.mxu0 0.0
        %1823 = vmatpush1.msra.mxu0 0.0
        %1824 = vmatprep.subr.mxu0 0.0
        %1825 = vmatpush1.msra.mxu0 0.0
        %1826 = vmatprep.subr.mxu0 0.0
        %1827 = vmatpush1.msra.mxu0 0.0
        %1828 = vmatprep.subr.mxu0 0.0
        %1829 = vmatpush1.msra.mxu0 0.0
        %1830 = vmatprep.subr.mxu0 0.0
        %1831 = vmatpush1.msra.mxu0 0.0
        %1832 = vmatprep.subr.mxu0 0.0
        %1833 = vmatpush1.msra.mxu0 0.0
        %1834 = vmatprep.subr.mxu0 0.0
        %1835 = vmatpush1.msra.mxu0 0.0
        %1836 = vmatprep.subr.mxu0 0.0
        %1837 = vmatpush1.msra.mxu0 0.0
        %1838 = vmatprep.subr.mxu0 0.0
        %1839 = vmatpush1.msra.mxu0 0.0
        %1840 = vmatprep.mubr.f32.mxu0 0.0
        %1841 = vmatmul.mubr.f32.gmra.mrb[0].mxu0 %v1774
        %v1842 = vpop.f32.mrb[0].mxu0
        %v1843 = vadd.f32 0.0, %v1842
        %v1844 = vpop.f32.mrb[0].mxu0
        %1845 = vdwg.mxu0
        %v1846 = vrcp.pop %v1769
        %v1847 = vmul.f32 %v1843, %v1846
        %1849 = vrot.lane.b32.xlu0 %v1847, 96
        %v1850 = vpop.permute.xlu0 %1849
        %1852 = vst.msk [vmem:[#allocation2 + $0x8] sm:$0xff] %vm1179, %v1850
        %v1853 = vld [vmem:[#allocation2] sm:$0xff]
        %v1854 = vld [vmem:[#allocation2 + $0x8] sm:$0xff]
        %v1855 = vld [vmem:[%s3] sm:$0xff]
        %v1856 = vld [vmem:[%s3 + $0x8] sm:$0xff]
        %v1857 = vld [vmem:[%s3 + $0x10] sm:$0xff]
        %v1858 = vld [vmem:[%s3 + $0x18] sm:$0xff]
        %v1859 = vld [vmem:[%s3 + $0x20] sm:$0xff]
        %v1860 = vld [vmem:[%s3 + $0x28] sm:$0xff]
        %v1861 = vld [vmem:[%s3 + $0x30] sm:$0xff]
        %v1862 = vld [vmem:[%s3 + $0x38] sm:$0xff]
        %v1863 = vld [vmem:[%s3 + $0x40] sm:$0xff]
        %v1864 = vld [vmem:[%s3 + $0x48] sm:$0xff]
        %v1865 = vld [vmem:[%s3 + $0x50] sm:$0xff]
        %v1866 = vld [vmem:[%s3 + $0x58] sm:$0xff]
        %v1867 = vld [vmem:[%s3 + $0x60] sm:$0xff]
        %v1868 = vld [vmem:[%s3 + $0x68] sm:$0xff]
        %v1869 = vld [vmem:[%s3 + $0x70] sm:$0xff]
        %v1870 = vld [vmem:[%s3 + $0x78] sm:$0xff]
        %v1871 = vld [vmem:[%s3 + $0x80] sm:$0xff]
        %v1872 = vld [vmem:[%s3 + $0x88] sm:$0xff]
        %v1873 = vld [vmem:[%s3 + $0x90] sm:$0xff]
        %v1874 = vld [vmem:[%s3 + $0x98] sm:$0xff]
        %v1875 = vld [vmem:[%s3 + $0xa0] sm:$0xff]
        %v1876 = vld [vmem:[%s3 + $0xa8] sm:$0xff]
        %v1877 = vld [vmem:[%s3 + $0xb0] sm:$0xff]
        %v1878 = vld [vmem:[%s3 + $0xb8] sm:$0xff]
        %v1879 = vld [vmem:[%s3 + $0xc0] sm:$0xff]
        %v1880 = vld [vmem:[%s3 + $0xc8] sm:$0xff]
        %v1881 = vld [vmem:[%s3 + $0xd0] sm:$0xff]
        %v1882 = vld [vmem:[%s3 + $0xd8] sm:$0xff]
        %v1883 = vld [vmem:[%s3 + $0xe0] sm:$0xff]
        %v1884 = vld [vmem:[%s3 + $0xe8] sm:$0xff]
        %v1885 = vld [vmem:[%s3 + $0xf0] sm:$0xff]
        %v1886 = vld [vmem:[%s3 + $0xf8] sm:$0xff]
        %v1887 = vld [vmem:[%s4] sm:$0x1]
        %v1889 = vlaneseq
        %v1890 = vshrl.u32 %v1889, 7
        %v1891 = vsub.s32 0, %v1890
        %v1892 = vrot.slane %v1887, %v1891
        %1894 = vmatprep.subr.mxu0 0.0
        %1895 = vmatpush1.msra.mxu0 %v1855
        %1896 = vmatprep.subr.mxu0 0.0
        %1897 = vmatpush1.msra.mxu0 %v1856
        %1898 = vmatprep.subr.mxu0 0.0
        %1899 = vmatpush1.msra.mxu0 %v1857
        %1900 = vmatprep.subr.mxu0 0.0
        %1901 = vmatpush1.msra.mxu0 %v1858
        %1902 = vmatprep.subr.mxu0 0.0
        %1903 = vmatpush1.msra.mxu0 %v1859
        %1904 = vmatprep.subr.mxu0 0.0
        %1905 = vmatpush1.msra.mxu0 %v1860
        %1906 = vmatprep.subr.mxu0 0.0
        %1907 = vmatpush1.msra.mxu0 %v1861
        %1908 = vmatprep.subr.mxu0 0.0
        %1909 = vmatpush1.msra.mxu0 %v1862
        %1910 = vmatprep.subr.mxu0 0.0
        %1911 = vmatpush1.msra.mxu0 %v1863
        %1912 = vmatprep.subr.mxu0 0.0
        %1913 = vmatpush1.msra.mxu0 %v1864
        %1914 = vmatprep.subr.mxu0 0.0
        %1915 = vmatpush1.msra.mxu0 %v1865
        %1916 = vmatprep.subr.mxu0 0.0
        %1917 = vmatpush1.msra.mxu0 %v1866
        %1918 = vmatprep.subr.mxu0 0.0
        %1919 = vmatpush1.msra.mxu0 %v1867
        %1920 = vmatprep.subr.mxu0 0.0
        %1921 = vmatpush1.msra.mxu0 %v1868
        %1922 = vmatprep.subr.mxu0 0.0
        %1923 = vmatpush1.msra.mxu0 %v1869
        %1924 = vmatprep.subr.mxu0 0.0
        %1925 = vmatpush1.msra.mxu0 %v1870
        %1926 = vmatprep.subr.mxu0 0.0
        %1927 = vmatpush1.msra.mxu0 %v1871
        %1928 = vmatprep.subr.mxu0 0.0
        %1929 = vmatpush1.msra.mxu0 %v1872
        %1930 = vmatprep.subr.mxu0 0.0
        %1931 = vmatpush1.msra.mxu0 %v1873
        %1932 = vmatprep.subr.mxu0 0.0
        %1933 = vmatpush1.msra.mxu0 %v1874
        %1934 = vmatprep.subr.mxu0 0.0
        %1935 = vmatpush1.msra.mxu0 %v1875
        %1936 = vmatprep.subr.mxu0 0.0
        %1937 = vmatpush1.msra.mxu0 %v1876
        %1938 = vmatprep.subr.mxu0 0.0
        %1939 = vmatpush1.msra.mxu0 %v1877
        %1940 = vmatprep.subr.mxu0 0.0
        %1941 = vmatpush1.msra.mxu0 %v1878
        %1942 = vmatprep.subr.mxu0 0.0
        %1943 = vmatpush1.msra.mxu0 %v1879
        %1944 = vmatprep.subr.mxu0 0.0
        %1945 = vmatpush1.msra.mxu0 %v1880
        %1946 = vmatprep.subr.mxu0 0.0
        %1947 = vmatpush1.msra.mxu0 %v1881
        %1948 = vmatprep.subr.mxu0 0.0
        %1949 = vmatpush1.msra.mxu0 %v1882
        %1950 = vmatprep.subr.mxu0 0.0
        %1951 = vmatpush1.msra.mxu0 %v1883
        %1952 = vmatprep.subr.mxu0 0.0
        %1953 = vmatpush1.msra.mxu0 %v1884
        %1954 = vmatprep.subr.mxu0 0.0
        %1955 = vmatpush1.msra.mxu0 %v1885
        %1956 = vmatprep.subr.mxu0 0.0
        %1957 = vmatpush1.msra.mxu0 %v1886
        %1958 = vmatprep.mubr.f32.mxu0 %v1854
        %1959 = vmatmul.mubr.f32.gmra.mrb[0].mxu0 %v1853
        %v1960 = vpop.f32.mrb[0].mxu0
        %v1961 = vadd.f32 %v1892, %v1960
        %v1962 = vpop.f32.mrb[0].mxu0
        %1963 = vdwg.mxu0
        %1964 = vst.msk [vmem:[%s247] sm:$0xff] %vm269, %v1961
        %s1965 = sand.u32 %s158, 1
        %s1966 = scalar_lea.sflag [#allocation4], %s1965
        %s1967 = sand.u32 %s158, 1
        %s1968 = smul.addr %s1967, 8
        %s1969 = scalar_lea.vmem [#allocation3], %s1968
        // Predicated region
        $region41: #{tpu_custom_call.1} parent=39 // pred_check
          %p1970 = pneg %p168
        $region42: #{tpu_custom_call.1} parent=39 // pred_check_branch
          %1972 = sbr.rel (%p1970) target = $region44
        $region43: #{tpu_custom_call.1} parent=39 // pred_region
          %s1973 = sadd.s32 %s23, %s24
          %s1975 = ssub.s32 128, 128
          %1976 = vsyncadd %s1966, %s1975
          %s1977 = smul.addr %s1973, 128
          %s1978 = scalar_lea.hbm %s5, %s1977
          %s1980 = sshll.u32 %s1969, 4
          %s1981 = int_to_ptr.vmem [resolvable:$true] %s1980
          %1983 = dma.vmem_to_hbm [thread:$0]  %s1981, 128, %s1978, %s1966
        $region44: #{tpu_custom_call.1} parent=39 // pred_fallthru
          _
      $region40: #{tpu_custom_call.1} parent=5 // pred_fallthru
        _
      %p1984 = scmp.le.s32.totalorder 2, %s14
      // Predicated region
      $region45: #{tpu_custom_call.1} parent=5 // pred_check
        %p1985 = pneg %p1984
      $region46: #{tpu_custom_call.1} parent=5 // pred_check_branch
        %1987 = sbr.rel (%p1985) target = $region48
      $region47: #{tpu_custom_call.1} parent=5 // pred_region
        %s1988 = ssub.s32 %s14, 2
        // Predicated region
        $region49: #{tpu_custom_call.1} parent=47 // pred_check
          %p1989 = pneg %p174
        $region50: #{tpu_custom_call.1} parent=47 // pred_check_branch
          %1991 = sbr.rel (%p1989) target = $region52
        $region51: #{tpu_custom_call.1} parent=47 // pred_region
          %s1992 = sand.u32 %s159, 1
          %s1993 = scalar_lea.sflag [#allocation4], %s1992
          %s1994 = sand.u32 %s159, 1
          %s1995 = smul.addr %s1994, 8
          %s1996 = scalar_lea.vmem [#allocation3], %s1995
          %1997 = dma.done %s1993, 128
        $region52: #{tpu_custom_call.1} parent=47 // pred_fallthru
          _
      $region48: #{tpu_custom_call.1} parent=5 // pred_fallthru
        _
    $region6: #{tpu_custom_call.1} parent=1 // loop_footer
      %s18 = sadd.s32 1, %s14
    $region7: #{tpu_custom_call.1} parent=1 // loop_footer_branch
      %13 = sbr.rel target = $region3
    $region8: #{tpu_custom_call.1} parent=1 // loop_exit
      _
    %1998 = vsyncpa [#allocation4], 1
    %s1999 = scalar_lea.sflag [#allocation4], 1
    %2000 = vsyncpa %s1999, 1

</llo_original>
